<compile_context>
chip_gen: v7x
topology: tpu7x:2x2x1
jax: 0.10.0
libtpu: 0.0.40
codegen_flags: <defaults>
</compile_context>

<pallas_src>
import jax
import jax.numpy as jnp
from jax.experimental import pallas as pl
from jax.experimental.pallas import tpu as pltpu


LN_EPS = 1e-5
TILE_B_MAX = 512      # rows per grid step for large batches
SMALL_BATCH = 64      # below this, skip the kernel (fused XLA path)


def _cdiv(a, b):
    return -(-a // b)


def _round_up(x, m):
    return _cdiv(x, m) * m


def _layernorm(x, gamma, beta):
    """LayerNorm over the last axis, biased variance (matches torch.nn.LayerNorm).

    One-pass stats (sum x, sum x^2 both come straight from x); variance is
    clamped at 0 to guard against f32 cancellation going slightly negative.
    """
    mean = jnp.mean(x, axis=-1, keepdims=True)
    mean_sq = jnp.mean(x * x, axis=-1, keepdims=True)
    var = jnp.maximum(mean_sq - mean * mean, 0.0)
    inv = jax.lax.rsqrt(var + LN_EPS)
    return (x - mean) * inv * gamma + beta


def _mlp_forward(x, params):
    """Fused plain-JAX forward (bf16 matmuls, f32 accumulation / LayerNorm).

    Used both as the small-batch fast path and as the numerical reference.
    """
    h = jnp.dot(x.astype(jnp.bfloat16), params["w1"],
                preferred_element_type=jnp.float32) + params["b1"]
    h = _layernorm(h, params["g1"], params["be1"])
    h = jnp.maximum(h, 0.0).astype(jnp.bfloat16)
    h = jnp.dot(h, params["w2"], preferred_element_type=jnp.float32) + params["b2"]
    h = _layernorm(h, params["g2"], params["be2"])
    h = jnp.maximum(h, 0.0).astype(jnp.bfloat16)
    return jnp.dot(h, params["w3"], preferred_element_type=jnp.float32) + params["b3"]


def policy_net_kernel(
    x_ref,
    w1_ref, b1_ref, g1_ref, be1_ref,
    w2_ref, b2_ref, g2_ref, be2_ref,
    w3_ref, b3_ref,
    out_ref,
):
    # x arrives already in bf16 (cast hoisted to the wrapper).
    x = x_ref[...]

    # Layer 1: Linear(state_dim+4 -> 256) + LayerNorm(256) + ReLU
    h1 = jnp.dot(x, w1_ref[...], preferred_element_type=jnp.float32) + b1_ref[...]
    h1 = _layernorm(h1, g1_ref[...], be1_ref[...])
    h1 = jnp.maximum(h1, 0.0).astype(jnp.bfloat16)

    # Layer 2: Linear(256 -> 128) + LayerNorm(128) + ReLU
    h2 = jnp.dot(h1, w2_ref[...], preferred_element_type=jnp.float32) + b2_ref[...]
    h2 = _layernorm(h2, g2_ref[...], be2_ref[...])
    h2 = jnp.maximum(h2, 0.0).astype(jnp.bfloat16)

    # Layer 3: Linear(128 -> action_dim), narrow (unpadded) output store.
    logits = jnp.dot(h2, w3_ref[...], preferred_element_type=jnp.float32) + b3_ref[...]
    out_ref[...] = logits.astype(out_ref.dtype)


@jax.jit
def policy_network_forward(state, params):
    """Forward pass of PolicyNetwork.actor.

    `state` is (B, state_dim+4) or (state_dim+4,) (matches `state.unsqueeze(0)`).
    Returns (B, action_dim) float32 logits.
    """
    if state.ndim == 1:
        state = state[None, :]
    B, in_dim = state.shape
    action_dim = params["w3"].shape[1]

    # Cast input to bf16 once in the wrapper (halves the per-tile input DMA,
    # no in-kernel VPU cast).
    x = state.astype(jnp.bfloat16)

    # Tiny-batch / single-state path: the kernel would be pure launch + pad
    # overhead; a fused XLA path is cheaper.
    if B < SMALL_BATCH:
        return _mlp_forward(x, params)

    # Batch tiling: large tiles amortize per-grid-step overhead, but keep at
    # least two tiles so the "parallel" axis can use both v7x TensorCores.
    tile_b = min(TILE_B_MAX, _round_up(_cdiv(B, 2), 8))
    n_tiles = _cdiv(B, tile_b)
    b_pad = n_tiles * tile_b
    if b_pad != B:
        x = jnp.pad(x, ((0, b_pad - B), (0, 0)))

    # Weights / biases / LN params: full-array blocks with a constant block
    # index -> VMEM-resident across grid iterations (no re-DMA).
    def resident(a):
        return pl.BlockSpec(a.shape, lambda i: (0, 0))

    weight_args = (
        params["w1"], params["b1"], params["g1"], params["be1"],
        params["w2"], params["b2"], params["g2"], params["be2"],
        params["w3"], params["b3"],
    )
    in_specs = [pl.BlockSpec((tile_b, in_dim), lambda i: (i, 0))]
    in_specs += [resident(a) for a in weight_args]

    out = pl.pallas_call(
        policy_net_kernel,
        out_shape=jax.ShapeDtypeStruct((b_pad, action_dim), jnp.float32),
        grid=(n_tiles,),
        in_specs=in_specs,
        out_specs=pl.BlockSpec((tile_b, action_dim), lambda i: (i, 0)),
        compiler_params=pltpu.CompilerParams(
            dimension_semantics=("parallel",),  # shard batch tiles across TCs (v7x)
        ),
    )(x, *weight_args)

    return out[:B] if b_pad != B else out


def init_params(key, state_dim, action_dim):
    """nn.Linear default init (U[-1/sqrt(fan_in), 1/sqrt(fan_in)]).

    Weights in bfloat16 (MXU input dtype); biases / LayerNorm params in f32.
    """
    in_dim = state_dim + 4
    dims = [(in_dim, 256), (256, 128), (128, action_dim)]
    params = {}
    keys = jax.random.split(key, 2 * len(dims))
    for i, (fan_in, fan_out) in enumerate(dims):
        bound = 1.0 / jnp.sqrt(jnp.float32(fan_in))
        w = jax.random.uniform(keys[2 * i], (fan_in, fan_out), jnp.float32, -bound, bound)
        b = jax.random.uniform(keys[2 * i + 1], (1, fan_out), jnp.float32, -bound, bound)
        params[f"w{i+1}"] = w.astype(jnp.bfloat16)
        params[f"b{i+1}"] = b
    # LayerNorm params (elementwise_affine=True defaults: gamma=1, beta=0)
    params["g1"] = jnp.ones((1, 256), jnp.float32)
    params["be1"] = jnp.zeros((1, 256), jnp.float32)
    params["g2"] = jnp.ones((1, 128), jnp.float32)
    params["be2"] = jnp.zeros((1, 128), jnp.float32)
    return params


if __name__ == "__main__":
    state_dim = 12       # Linear input = state_dim + 4 = 16
    action_dim = 8
    batch = 256          # -> 2 grid tiles of 128 rows (exercises the grid axis)

    key = jax.random.PRNGKey(0)
    pkey, xkey = jax.random.split(key)
    params = init_params(pkey, state_dim, action_dim)
    state = jax.random.normal(xkey, (batch, state_dim + 4), jnp.float32)

    logits = jax.block_until_ready(policy_network_forward(state, params))
    ref = _mlp_forward(state, params)
    assert logits.shape == (batch, action_dim)
    assert jnp.allclose(logits, ref, atol=2e-2, rtol=2e-2)

    # Batch not divisible by the tile (exercises row padding + row slice).
    odd = jax.block_until_ready(policy_network_forward(state[:200], params))
    assert odd.shape == (200, action_dim)
    assert jnp.allclose(odd, ref[:200], atol=2e-2, rtol=2e-2)

    # 1-D state path (matches `state.unsqueeze(0)` in PyTorch) -> XLA fast path.
    single = jax.block_until_ready(policy_network_forward(state[0], params))
    assert single.shape == (1, action_dim)
    assert jnp.allclose(single, ref[0:1], atol=2e-2, rtol=2e-2)

    print("KERNEL_OK")
</pallas_src>

<mosaic_0001>
module attributes {stable_mosaic.version = 11 : i64} {
  func.func @policy_net_kernel(%arg0: i32, %arg1: memref<128x16xbf16, #tpu.memory_space<vmem>>, %arg2: memref<16x256xbf16, #tpu.memory_space<vmem>>, %arg3: memref<1x256xf32, #tpu.memory_space<vmem>>, %arg4: memref<1x256xf32, #tpu.memory_space<vmem>>, %arg5: memref<1x256xf32, #tpu.memory_space<vmem>>, %arg6: memref<256x128xbf16, #tpu.memory_space<vmem>>, %arg7: memref<1x128xf32, #tpu.memory_space<vmem>>, %arg8: memref<1x128xf32, #tpu.memory_space<vmem>>, %arg9: memref<1x128xf32, #tpu.memory_space<vmem>>, %arg10: memref<128x8xbf16, #tpu.memory_space<vmem>>, %arg11: memref<1x8xf32, #tpu.memory_space<vmem>>, %arg12: memref<128x8xf32, #tpu.memory_space<vmem>>) attributes {dimension_semantics = [#tpu.dimension_semantics<parallel>], iteration_bounds = array<i64: 2>, scalar_prefetch = 0 : i64, scratch_operands = 0 : i64, tpu.core_type = #tpu.core_type<tc>, window_params = [{transform_indices = @transform_0, window_bounds = array<i64: 128, 16>}, {pipeline_mode = #tpu.pipeline_mode<synchronous>, transform_indices = @transform_1, window_bounds = array<i64: 16, 256>}, {pipeline_mode = #tpu.pipeline_mode<synchronous>, transform_indices = @transform_2, window_bounds = array<i64: 1, 256>}, {pipeline_mode = #tpu.pipeline_mode<synchronous>, transform_indices = @transform_3, window_bounds = array<i64: 1, 256>}, {pipeline_mode = #tpu.pipeline_mode<synchronous>, transform_indices = @transform_4, window_bounds = array<i64: 1, 256>}, {pipeline_mode = #tpu.pipeline_mode<synchronous>, transform_indices = @transform_5, window_bounds = array<i64: 256, 128>}, {pipeline_mode = #tpu.pipeline_mode<synchronous>, transform_indices = @transform_6, window_bounds = array<i64: 1, 128>}, {pipeline_mode = #tpu.pipeline_mode<synchronous>, transform_indices = @transform_7, window_bounds = array<i64: 1, 128>}, {pipeline_mode = #tpu.pipeline_mode<synchronous>, transform_indices = @transform_8, window_bounds = array<i64: 1, 128>}, {pipeline_mode = #tpu.pipeline_mode<synchronous>, transform_indices = @transform_9, window_bounds = array<i64: 128, 8>}, {pipeline_mode = #tpu.pipeline_mode<synchronous>, transform_indices = @transform_10, window_bounds = array<i64: 1, 8>}, {transform_indices = @transform_11, window_bounds = array<i64: 128, 8>}]} {
    %c0 = arith.constant 0 : index
    %c0_0 = arith.constant 0 : index
    %0 = vector.load %arg1[%c0, %c0_0] : memref<128x16xbf16, #tpu.memory_space<vmem>>, vector<128x16xbf16>
    %c0_1 = arith.constant 0 : index
    %c0_2 = arith.constant 0 : index
    %1 = vector.load %arg2[%c0_1, %c0_2] : memref<16x256xbf16, #tpu.memory_space<vmem>>, vector<16x256xbf16>
    %cst = arith.constant dense<0.000000e+00> : vector<128x256xf32>
    %2 = tpu.matmul %0, %1, %cst {dimension_numbers = #tpu.dot_dimension_numbers<[1], [0], [0], [1], [0, 0, 1, 1], [], []>} : vector<128x16xbf16>, vector<16x256xbf16>, vector<128x256xf32> -> vector<128x256xf32>
    %c0_3 = arith.constant 0 : index
    %c0_4 = arith.constant 0 : index
    %3 = vector.load %arg3[%c0_3, %c0_4] : memref<1x256xf32, #tpu.memory_space<vmem>>, vector<1x256xf32>
    %4 = vector.broadcast %3 : vector<1x256xf32> to vector<128x256xf32>
    %5 = arith.addf %2, %4 : vector<128x256xf32>
    %c0_5 = arith.constant 0 : index
    %c0_6 = arith.constant 0 : index
    %6 = vector.load %arg4[%c0_5, %c0_6] : memref<1x256xf32, #tpu.memory_space<vmem>>, vector<1x256xf32>
    %c0_7 = arith.constant 0 : index
    %c0_8 = arith.constant 0 : index
    %7 = vector.load %arg5[%c0_7, %c0_8] : memref<1x256xf32, #tpu.memory_space<vmem>>, vector<1x256xf32>
    %cst_9 = arith.constant dense<0.000000e+00> : vector<128xf32>
    %8 = vector.multi_reduction <add>, %5, %cst_9 [1] : vector<128x256xf32> to vector<128xf32>
    %9 = vector.shape_cast %8 : vector<128xf32> to vector<128x1xf32>
    %cst_10 = arith.constant 2.560000e+02 : f32
    %10 = vector.broadcast %cst_10 : f32 to vector<128x1xf32>
    %11 = arith.divf %9, %10 : vector<128x1xf32>
    %12 = arith.mulf %5, %5 : vector<128x256xf32>
    %cst_11 = arith.constant dense<0.000000e+00> : vector<128xf32>
    %13 = vector.multi_reduction <add>, %12, %cst_11 [1] : vector<128x256xf32> to vector<128xf32>
    %14 = vector.shape_cast %13 : vector<128xf32> to vector<128x1xf32>
    %cst_12 = arith.constant 2.560000e+02 : f32
    %15 = vector.broadcast %cst_12 : f32 to vector<128x1xf32>
    %16 = arith.divf %14, %15 : vector<128x1xf32>
    %17 = arith.mulf %11, %11 : vector<128x1xf32>
    %18 = arith.subf %16, %17 : vector<128x1xf32>
    %cst_13 = arith.constant 0.000000e+00 : f32
    %19 = vector.broadcast %cst_13 : f32 to vector<128x1xf32>
    %20 = arith.maximumf %18, %19 : vector<128x1xf32>
    %cst_14 = arith.constant 9.99999974E-6 : f32
    %21 = vector.broadcast %cst_14 : f32 to vector<128x1xf32>
    %22 = arith.addf %20, %21 : vector<128x1xf32>
    %23 = math.rsqrt %22 : vector<128x1xf32>
    %24 = vector.broadcast %11 : vector<128x1xf32> to vector<128x256xf32>
    %25 = arith.subf %5, %24 : vector<128x256xf32>
    %26 = vector.broadcast %23 : vector<128x1xf32> to vector<128x256xf32>
    %27 = arith.mulf %25, %26 : vector<128x256xf32>
    %28 = vector.broadcast %6 : vector<1x256xf32> to vector<128x256xf32>
    %29 = arith.mulf %27, %28 : vector<128x256xf32>
    %30 = vector.broadcast %7 : vector<1x256xf32> to vector<128x256xf32>
    %31 = arith.addf %29, %30 : vector<128x256xf32>
    %cst_15 = arith.constant 0.000000e+00 : f32
    %32 = vector.broadcast %cst_15 : f32 to vector<128x256xf32>
    %33 = arith.maximumf %31, %32 : vector<128x256xf32>
    %34 = arith.truncf %33 : vector<128x256xf32> to vector<128x256xbf16>
    %c0_16 = arith.constant 0 : index
    %c0_17 = arith.constant 0 : index
    %35 = vector.load %arg6[%c0_16, %c0_17] : memref<256x128xbf16, #tpu.memory_space<vmem>>, vector<256x128xbf16>
    %cst_18 = arith.constant dense<0.000000e+00> : vector<128x128xf32>
    %36 = tpu.matmul %34, %35, %cst_18 {dimension_numbers = #tpu.dot_dimension_numbers<[1], [0], [0], [1], [0, 0, 1, 1], [], []>} : vector<128x256xbf16>, vector<256x128xbf16>, vector<128x128xf32> -> vector<128x128xf32>
    %c0_19 = arith.constant 0 : index
    %c0_20 = arith.constant 0 : index
    %37 = vector.load %arg7[%c0_19, %c0_20] : memref<1x128xf32, #tpu.memory_space<vmem>>, vector<1x128xf32>
    %38 = vector.broadcast %37 : vector<1x128xf32> to vector<128x128xf32>
    %39 = arith.addf %36, %38 : vector<128x128xf32>
    %c0_21 = arith.constant 0 : index
    %c0_22 = arith.constant 0 : index
    %40 = vector.load %arg8[%c0_21, %c0_22] : memref<1x128xf32, #tpu.memory_space<vmem>>, vector<1x128xf32>
    %c0_23 = arith.constant 0 : index
    %c0_24 = arith.constant 0 : index
    %41 = vector.load %arg9[%c0_23, %c0_24] : memref<1x128xf32, #tpu.memory_space<vmem>>, vector<1x128xf32>
    %cst_25 = arith.constant dense<0.000000e+00> : vector<128xf32>
    %42 = vector.multi_reduction <add>, %39, %cst_25 [1] : vector<128x128xf32> to vector<128xf32>
    %43 = vector.shape_cast %42 : vector<128xf32> to vector<128x1xf32>
    %cst_26 = arith.constant 1.280000e+02 : f32
    %44 = vector.broadcast %cst_26 : f32 to vector<128x1xf32>
    %45 = arith.divf %43, %44 : vector<128x1xf32>
    %46 = arith.mulf %39, %39 : vector<128x128xf32>
    %cst_27 = arith.constant dense<0.000000e+00> : vector<128xf32>
    %47 = vector.multi_reduction <add>, %46, %cst_27 [1] : vector<128x128xf32> to vector<128xf32>
    %48 = vector.shape_cast %47 : vector<128xf32> to vector<128x1xf32>
    %cst_28 = arith.constant 1.280000e+02 : f32
    %49 = vector.broadcast %cst_28 : f32 to vector<128x1xf32>
    %50 = arith.divf %48, %49 : vector<128x1xf32>
    %51 = arith.mulf %45, %45 : vector<128x1xf32>
    %52 = arith.subf %50, %51 : vector<128x1xf32>
    %cst_29 = arith.constant 0.000000e+00 : f32
    %53 = vector.broadcast %cst_29 : f32 to vector<128x1xf32>
    %54 = arith.maximumf %52, %53 : vector<128x1xf32>
    %cst_30 = arith.constant 9.99999974E-6 : f32
    %55 = vector.broadcast %cst_30 : f32 to vector<128x1xf32>
    %56 = arith.addf %54, %55 : vector<128x1xf32>
    %57 = math.rsqrt %56 : vector<128x1xf32>
    %58 = vector.broadcast %45 : vector<128x1xf32> to vector<128x128xf32>
    %59 = arith.subf %39, %58 : vector<128x128xf32>
    %60 = vector.broadcast %57 : vector<128x1xf32> to vector<128x128xf32>
    %61 = arith.mulf %59, %60 : vector<128x128xf32>
    %62 = vector.broadcast %40 : vector<1x128xf32> to vector<128x128xf32>
    %63 = arith.mulf %61, %62 : vector<128x128xf32>
    %64 = vector.broadcast %41 : vector<1x128xf32> to vector<128x128xf32>
    %65 = arith.addf %63, %64 : vector<128x128xf32>
    %cst_31 = arith.constant 0.000000e+00 : f32
    %66 = vector.broadcast %cst_31 : f32 to vector<128x128xf32>
    %67 = arith.maximumf %65, %66 : vector<128x128xf32>
    %68 = arith.truncf %67 : vector<128x128xf32> to vector<128x128xbf16>
    %c0_32 = arith.constant 0 : index
    %c0_33 = arith.constant 0 : index
    %69 = vector.load %arg10[%c0_32, %c0_33] : memref<128x8xbf16, #tpu.memory_space<vmem>>, vector<128x8xbf16>
    %cst_34 = arith.constant dense<0.000000e+00> : vector<128x8xf32>
    %70 = tpu.matmul %68, %69, %cst_34 {dimension_numbers = #tpu.dot_dimension_numbers<[1], [0], [0], [1], [0, 0, 1, 1], [], []>} : vector<128x128xbf16>, vector<128x8xbf16>, vector<128x8xf32> -> vector<128x8xf32>
    %c0_35 = arith.constant 0 : index
    %c0_36 = arith.constant 0 : index
    %71 = vector.load %arg11[%c0_35, %c0_36] : memref<1x8xf32, #tpu.memory_space<vmem>>, vector<1x8xf32>
    %72 = vector.broadcast %71 : vector<1x8xf32> to vector<128x8xf32>
    %73 = arith.addf %70, %72 : vector<128x8xf32>
    %c0_37 = arith.constant 0 : index
    %c0_38 = arith.constant 0 : index
    %74 = vector.load %arg12[%c0_37, %c0_38] : memref<128x8xf32, #tpu.memory_space<vmem>>, vector<128x8xf32>
    tpu.vector_store %arg12[%c0_37, %c0_38], %73 {strides = array<i32>} : memref<128x8xf32, #tpu.memory_space<vmem>>, vector<128x8xf32>,
    return
  }
  func.func @transform_0(%arg0: i32) -> (i32, i32) {
    %c0_i32 = arith.constant 0 : i32
    %c0_i32_0 = arith.constant 0 : i32
    return %arg0, %c0_i32 : i32, i32
  }
  func.func @transform_1(%arg0: i32) -> (i32, i32) {
    %c0_i32 = arith.constant 0 : i32
    %c0_i32_0 = arith.constant 0 : i32
    %c0_i32_1 = arith.constant 0 : i32
    return %c0_i32, %c0_i32_0 : i32, i32
  }
  func.func @transform_2(%arg0: i32) -> (i32, i32) {
    %c0_i32 = arith.constant 0 : i32
    %c0_i32_0 = arith.constant 0 : i32
    %c0_i32_1 = arith.constant 0 : i32
    return %c0_i32, %c0_i32_0 : i32, i32
  }
  func.func @transform_3(%arg0: i32) -> (i32, i32) {
    %c0_i32 = arith.constant 0 : i32
    %c0_i32_0 = arith.constant 0 : i32
    %c0_i32_1 = arith.constant 0 : i32
    return %c0_i32, %c0_i32_0 : i32, i32
  }
  func.func @transform_4(%arg0: i32) -> (i32, i32) {
    %c0_i32 = arith.constant 0 : i32
    %c0_i32_0 = arith.constant 0 : i32
    %c0_i32_1 = arith.constant 0 : i32
    return %c0_i32, %c0_i32_0 : i32, i32
  }
  func.func @transform_5(%arg0: i32) -> (i32, i32) {
    %c0_i32 = arith.constant 0 : i32
    %c0_i32_0 = arith.constant 0 : i32
    %c0_i32_1 = arith.constant 0 : i32
    return %c0_i32, %c0_i32_0 : i32, i32
  }
  func.func @transform_6(%arg0: i32) -> (i32, i32) {
    %c0_i32 = arith.constant 0 : i32
    %c0_i32_0 = arith.constant 0 : i32
    %c0_i32_1 = arith.constant 0 : i32
    return %c0_i32, %c0_i32_0 : i32, i32
  }
  func.func @transform_7(%arg0: i32) -> (i32, i32) {
    %c0_i32 = arith.constant 0 : i32
    %c0_i32_0 = arith.constant 0 : i32
    %c0_i32_1 = arith.constant 0 : i32
    return %c0_i32, %c0_i32_0 : i32, i32
  }
  func.func @transform_8(%arg0: i32) -> (i32, i32) {
    %c0_i32 = arith.constant 0 : i32
    %c0_i32_0 = arith.constant 0 : i32
    %c0_i32_1 = arith.constant 0 : i32
    return %c0_i32, %c0_i32_0 : i32, i32
  }
  func.func @transform_9(%arg0: i32) -> (i32, i32) {
    %c0_i32 = arith.constant 0 : i32
    %c0_i32_0 = arith.constant 0 : i32
    %c0_i32_1 = arith.constant 0 : i32
    return %c0_i32, %c0_i32_0 : i32, i32
  }
  func.func @transform_10(%arg0: i32) -> (i32, i32) {
    %c0_i32 = arith.constant 0 : i32
    %c0_i32_0 = arith.constant 0 : i32
    %c0_i32_1 = arith.constant 0 : i32
    return %c0_i32, %c0_i32_0 : i32, i32
  }
  func.func @transform_11(%arg0: i32) -> (i32, i32) {
    %c0_i32 = arith.constant 0 : i32
    %c0_i32_0 = arith.constant 0 : i32
    return %arg0, %c0_i32 : i32, i32
  }
}

</mosaic_0001>

<llo_original>
// kernel: policy_network_forward.1
$region0: #{policy_network_forward.1}
  #allocation0 [shape = 'u32[]', space=smem, size = 0x4, offset = 0x4, fixed_abs, tag = 'smem constant byte address 0x4 - core index']
  #allocation1 [shape = 'u32[144,128]{1,0:T(1,128)}', space=vmem, size = 0x12000, scoped, tag = 'internal scratch']
  %s0 = inlined_call_operand.vmem [shape: bf16[256,16], index: 0, kind: input, shape index: {}]
  %s1 = inlined_call_operand.vmem [shape: bf16[16,256], index: 1, kind: input, shape index: {}]
  %s2 = inlined_call_operand.vmem [shape: f32[1,256], index: 2, kind: input, shape index: {}]
  %s3 = inlined_call_operand.vmem [shape: f32[1,256], index: 3, kind: input, shape index: {}]
  %s4 = inlined_call_operand.vmem [shape: f32[1,256], index: 4, kind: input, shape index: {}]
  %s5 = inlined_call_operand.vmem [shape: bf16[256,128], index: 5, kind: input, shape index: {}]
  %s6 = inlined_call_operand.vmem [shape: f32[1,128], index: 6, kind: input, shape index: {}]
  %s7 = inlined_call_operand.vmem [shape: f32[1,128], index: 7, kind: input, shape index: {}]
  %s8 = inlined_call_operand.vmem [shape: f32[1,128], index: 8, kind: input, shape index: {}]
  %s9 = inlined_call_operand.vmem [shape: bf16[128,8], index: 9, kind: input, shape index: {}]
  %s10 = inlined_call_operand.vmem [shape: f32[1,8], index: 10, kind: input, shape index: {}]
  %s11 = inlined_call_operand.vmem [shape: f32[256,8], index: 11, kind: output, shape index: {}]
  %s12 = sld [smem:[#allocation0]]
  $region77: #{policy_network_forward.1} parent=0
    _
  %s14 = ssub.s32 1, %s12
  %s15 = scalar_select 0, %s14, %s12
  loop: start=0, step=1, limit=4
  $region2: #{policy_network_forward.1} parent=0 // loop_pre_header
    _
  $region3: #{policy_network_forward.1} parent=0 // loop_header
    %s17 = sphi 0, %s21
    %p18 = scmp.ge.s32.totalorder %s17, 4
    %s27 = sphi 0, %s29
    %s30 = sphi 0, %s27
    %s31 = sphi 0, %s30
    %s47 = sphi 0, %s31
    %s51 = sphi 0, %s51
    %s53 = sphi 0, %s51
    %s54 = sphi 0, %s53
    %s68 = sphi 0, %s54
    %s72 = sphi 0, %s72
    %s74 = sphi 0, %s72
    %s75 = sphi 0, %s74
    %s89 = sphi 0, %s75
    %s93 = sphi 0, %s93
    %s95 = sphi 0, %s93
    %s96 = sphi 0, %s95
    %s110 = sphi 0, %s96
    %s114 = sphi 0, %s114
    %s116 = sphi 0, %s114
    %s117 = sphi 0, %s116
    %s131 = sphi 0, %s117
    %s135 = sphi 0, %s135
    %s137 = sphi 0, %s135
    %s138 = sphi 0, %s137
    %s152 = sphi 0, %s138
    %s156 = sphi 0, %s156
    %s158 = sphi 0, %s156
    %s159 = sphi 0, %s158
    %s173 = sphi 0, %s159
    %s177 = sphi 0, %s177
    %s179 = sphi 0, %s177
    %s180 = sphi 0, %s179
    %s194 = sphi 0, %s180
    %s198 = sphi 0, %s198
    %s200 = sphi 0, %s198
    %s201 = sphi 0, %s200
    %s215 = sphi 0, %s201
    %s219 = sphi 0, %s219
    %s221 = sphi 0, %s219
    %s222 = sphi 0, %s221
    %s236 = sphi 0, %s222
    %s240 = sphi 0, %s240
    %s242 = sphi 0, %s240
    %s243 = sphi 0, %s242
    %s257 = sphi 0, %s243
    %s263 = sphi 0, %s265
    %s266 = sphi 0, %s263
    %s267 = sphi 0, %s266
    %s283 = sphi 0, %s267
  $region4: #{policy_network_forward.1} parent=0 // loop_header_branch
    %20 = sbr.rel (%p18) target = $region8
  $region5: #{policy_network_forward.1} parent=0 // loop_body
    %s22 = ssub.s32 %s17, 1
    %s23 = ssub.s32 %s17, 2
    %s24 = sadd.s32 %s17, 1
    %s25 = ssub.s32 %s17, %s24
    %p26 = scmp.eq.s32.totalorder %s25, 0
    %s28 = sadd.s32 %s27, 1
    %s29 = scalar_select %p26, %s27, %s28
    %p32 = pneg %p26
    %p33 = scmp.eq.s32.totalorder %s17, 1
    %p34 = por %p32, %p33
    %p35 = scmp.ne.s32.totalorder %s27, %s30
    %p36 = scmp.eq.s32.totalorder %s17, 0
    %p37 = por %p35, %p36
    %p38 = scmp.ne.s32.totalorder %s27, %s30
    %p39 = scmp.eq.s32.totalorder %s22, 1
    %p40 = por %p38, %p39
    %p41 = scmp.ne.s32.totalorder %s30, %s31
    %p42 = scmp.eq.s32.totalorder %s22, 0
    %p43 = por %p41, %p42
    %p44 = scmp.ne.s32.totalorder %s30, %s31
    %p45 = scmp.eq.s32.totalorder %s23, 1
    %p46 = por %p44, %p45
    %p48 = scmp.ne.s32.totalorder %s31, %s47
    %p49 = scmp.eq.s32.totalorder %s23, 0
    %p50 = por %p48, %p49
    %s52 = sadd.s32 %s51, 1
    %p55 = scmp.eq.s32.totalorder %s17, 1
    %p56 = scmp.ne.s32.totalorder %s51, %s53
    %p57 = scmp.eq.s32.totalorder %s17, 0
    %p58 = por %p56, %p57
    %p59 = scmp.ne.s32.totalorder %s51, %s53
    %p60 = scmp.eq.s32.totalorder %s22, 1
    %p61 = por %p59, %p60
    %p62 = scmp.ne.s32.totalorder %s53, %s54
    %p63 = scmp.eq.s32.totalorder %s22, 0
    %p64 = por %p62, %p63
    %p65 = scmp.ne.s32.totalorder %s53, %s54
    %p66 = scmp.eq.s32.totalorder %s23, 1
    %p67 = por %p65, %p66
    %p69 = scmp.ne.s32.totalorder %s54, %s68
    %p70 = scmp.eq.s32.totalorder %s23, 0
    %p71 = por %p69, %p70
    %s73 = sadd.s32 %s72, 1
    %p76 = scmp.eq.s32.totalorder %s17, 1
    %p77 = scmp.ne.s32.totalorder %s72, %s74
    %p78 = scmp.eq.s32.totalorder %s17, 0
    %p79 = por %p77, %p78
    %p80 = scmp.ne.s32.totalorder %s72, %s74
    %p81 = scmp.eq.s32.totalorder %s22, 1
    %p82 = por %p80, %p81
    %p83 = scmp.ne.s32.totalorder %s74, %s75
    %p84 = scmp.eq.s32.totalorder %s22, 0
    %p85 = por %p83, %p84
    %p86 = scmp.ne.s32.totalorder %s74, %s75
    %p87 = scmp.eq.s32.totalorder %s23, 1
    %p88 = por %p86, %p87
    %p90 = scmp.ne.s32.totalorder %s75, %s89
    %p91 = scmp.eq.s32.totalorder %s23, 0
    %p92 = por %p90, %p91
    %s94 = sadd.s32 %s93, 1
    %p97 = scmp.eq.s32.totalorder %s17, 1
    %p98 = scmp.ne.s32.totalorder %s93, %s95
    %p99 = scmp.eq.s32.totalorder %s17, 0
    %p100 = por %p98, %p99
    %p101 = scmp.ne.s32.totalorder %s93, %s95
    %p102 = scmp.eq.s32.totalorder %s22, 1
    %p103 = por %p101, %p102
    %p104 = scmp.ne.s32.totalorder %s95, %s96
    %p105 = scmp.eq.s32.totalorder %s22, 0
    %p106 = por %p104, %p105
    %p107 = scmp.ne.s32.totalorder %s95, %s96
    %p108 = scmp.eq.s32.totalorder %s23, 1
    %p109 = por %p107, %p108
    %p111 = scmp.ne.s32.totalorder %s96, %s110
    %p112 = scmp.eq.s32.totalorder %s23, 0
    %p113 = por %p111, %p112
    %s115 = sadd.s32 %s114, 1
    %p118 = scmp.eq.s32.totalorder %s17, 1
    %p119 = scmp.ne.s32.totalorder %s114, %s116
    %p120 = scmp.eq.s32.totalorder %s17, 0
    %p121 = por %p119, %p120
    %p122 = scmp.ne.s32.totalorder %s114, %s116
    %p123 = scmp.eq.s32.totalorder %s22, 1
    %p124 = por %p122, %p123
    %p125 = scmp.ne.s32.totalorder %s116, %s117
    %p126 = scmp.eq.s32.totalorder %s22, 0
    %p127 = por %p125, %p126
    %p128 = scmp.ne.s32.totalorder %s116, %s117
    %p129 = scmp.eq.s32.totalorder %s23, 1
    %p130 = por %p128, %p129
    %p132 = scmp.ne.s32.totalorder %s117, %s131
    %p133 = scmp.eq.s32.totalorder %s23, 0
    %p134 = por %p132, %p133
    %s136 = sadd.s32 %s135, 1
    %p139 = scmp.eq.s32.totalorder %s17, 1
    %p140 = scmp.ne.s32.totalorder %s135, %s137
    %p141 = scmp.eq.s32.totalorder %s17, 0
    %p142 = por %p140, %p141
    %p143 = scmp.ne.s32.totalorder %s135, %s137
    %p144 = scmp.eq.s32.totalorder %s22, 1
    %p145 = por %p143, %p144
    %p146 = scmp.ne.s32.totalorder %s137, %s138
    %p147 = scmp.eq.s32.totalorder %s22, 0
    %p148 = por %p146, %p147
    %p149 = scmp.ne.s32.totalorder %s137, %s138
    %p150 = scmp.eq.s32.totalorder %s23, 1
    %p151 = por %p149, %p150
    %p153 = scmp.ne.s32.totalorder %s138, %s152
    %p154 = scmp.eq.s32.totalorder %s23, 0
    %p155 = por %p153, %p154
    %s157 = sadd.s32 %s156, 1
    %p160 = scmp.eq.s32.totalorder %s17, 1
    %p161 = scmp.ne.s32.totalorder %s156, %s158
    %p162 = scmp.eq.s32.totalorder %s17, 0
    %p163 = por %p161, %p162
    %p164 = scmp.ne.s32.totalorder %s156, %s158
    %p165 = scmp.eq.s32.totalorder %s22, 1
    %p166 = por %p164, %p165
    %p167 = scmp.ne.s32.totalorder %s158, %s159
    %p168 = scmp.eq.s32.totalorder %s22, 0
    %p169 = por %p167, %p168
    %p170 = scmp.ne.s32.totalorder %s158, %s159
    %p171 = scmp.eq.s32.totalorder %s23, 1
    %p172 = por %p170, %p171
    %p174 = scmp.ne.s32.totalorder %s159, %s173
    %p175 = scmp.eq.s32.totalorder %s23, 0
    %p176 = por %p174, %p175
    %s178 = sadd.s32 %s177, 1
    %p181 = scmp.eq.s32.totalorder %s17, 1
    %p182 = scmp.ne.s32.totalorder %s177, %s179
    %p183 = scmp.eq.s32.totalorder %s17, 0
    %p184 = por %p182, %p183
    %p185 = scmp.ne.s32.totalorder %s177, %s179
    %p186 = scmp.eq.s32.totalorder %s22, 1
    %p187 = por %p185, %p186
    %p188 = scmp.ne.s32.totalorder %s179, %s180
    %p189 = scmp.eq.s32.totalorder %s22, 0
    %p190 = por %p188, %p189
    %p191 = scmp.ne.s32.totalorder %s179, %s180
    %p192 = scmp.eq.s32.totalorder %s23, 1
    %p193 = por %p191, %p192
    %p195 = scmp.ne.s32.totalorder %s180, %s194
    %p196 = scmp.eq.s32.totalorder %s23, 0
    %p197 = por %p195, %p196
    %s199 = sadd.s32 %s198, 1
    %p202 = scmp.eq.s32.totalorder %s17, 1
    %p203 = scmp.ne.s32.totalorder %s198, %s200
    %p204 = scmp.eq.s32.totalorder %s17, 0
    %p205 = por %p203, %p204
    %p206 = scmp.ne.s32.totalorder %s198, %s200
    %p207 = scmp.eq.s32.totalorder %s22, 1
    %p208 = por %p206, %p207
    %p209 = scmp.ne.s32.totalorder %s200, %s201
    %p210 = scmp.eq.s32.totalorder %s22, 0
    %p211 = por %p209, %p210
    %p212 = scmp.ne.s32.totalorder %s200, %s201
    %p213 = scmp.eq.s32.totalorder %s23, 1
    %p214 = por %p212, %p213
    %p216 = scmp.ne.s32.totalorder %s201, %s215
    %p217 = scmp.eq.s32.totalorder %s23, 0
    %p218 = por %p216, %p217
    %s220 = sadd.s32 %s219, 1
    %p223 = scmp.eq.s32.totalorder %s17, 1
    %p224 = scmp.ne.s32.totalorder %s219, %s221
    %p225 = scmp.eq.s32.totalorder %s17, 0
    %p226 = por %p224, %p225
    %p227 = scmp.ne.s32.totalorder %s219, %s221
    %p228 = scmp.eq.s32.totalorder %s22, 1
    %p229 = por %p227, %p228
    %p230 = scmp.ne.s32.totalorder %s221, %s222
    %p231 = scmp.eq.s32.totalorder %s22, 0
    %p232 = por %p230, %p231
    %p233 = scmp.ne.s32.totalorder %s221, %s222
    %p234 = scmp.eq.s32.totalorder %s23, 1
    %p235 = por %p233, %p234
    %p237 = scmp.ne.s32.totalorder %s222, %s236
    %p238 = scmp.eq.s32.totalorder %s23, 0
    %p239 = por %p237, %p238
    %s241 = sadd.s32 %s240, 1
    %p244 = scmp.eq.s32.totalorder %s17, 1
    %p245 = scmp.ne.s32.totalorder %s240, %s242
    %p246 = scmp.eq.s32.totalorder %s17, 0
    %p247 = por %p245, %p246
    %p248 = scmp.ne.s32.totalorder %s240, %s242
    %p249 = scmp.eq.s32.totalorder %s22, 1
    %p250 = por %p248, %p249
    %p251 = scmp.ne.s32.totalorder %s242, %s243
    %p252 = scmp.eq.s32.totalorder %s22, 0
    %p253 = por %p251, %p252
    %p254 = scmp.ne.s32.totalorder %s242, %s243
    %p255 = scmp.eq.s32.totalorder %s23, 1
    %p256 = por %p254, %p255
    %p258 = scmp.ne.s32.totalorder %s243, %s257
    %p259 = scmp.eq.s32.totalorder %s23, 0
    %p260 = por %p258, %p259
    %s261 = ssub.s32 %s17, %s24
    %p262 = scmp.eq.s32.totalorder %s261, 0
    %s264 = sadd.s32 %s263, 1
    %s265 = scalar_select %p262, %s263, %s264
    %p268 = pneg %p262
    %p269 = scmp.eq.s32.totalorder %s17, 1
    %p270 = por %p268, %p269
    %p271 = scmp.ne.s32.totalorder %s263, %s266
    %p272 = scmp.eq.s32.totalorder %s17, 0
    %p273 = por %p271, %p272
    %p274 = scmp.ne.s32.totalorder %s263, %s266
    %p275 = scmp.eq.s32.totalorder %s22, 1
    %p276 = por %p274, %p275
    %p277 = scmp.ne.s32.totalorder %s266, %s267
    %p278 = scmp.eq.s32.totalorder %s22, 0
    %p279 = por %p277, %p278
    %p280 = scmp.ne.s32.totalorder %s266, %s267
    %p281 = scmp.eq.s32.totalorder %s23, 1
    %p282 = por %p280, %p281
    %p284 = scmp.ne.s32.totalorder %s267, %s283
    %p285 = scmp.eq.s32.totalorder %s23, 0
    %p286 = por %p284, %p285
    %p287 = scmp.le.s32.totalorder 1, %s17
    %p288 = scmp.lt.s32.totalorder %s17, 3
    %p289 = pnand %p287, %p288
    %p290 = pneg %p289
    // Predicated region
    $region9: #{policy_network_forward.1} parent=5 // pred_check
      _
    $region10: #{policy_network_forward.1} parent=5 // pred_check_branch
      %292 = sbr.rel (%p289) target = $region12
    $region11: #{policy_network_forward.1} parent=5 // pred_region
      %s293 = ssub.s32 %s17, 1
      // Predicated region
      $region13: #{policy_network_forward.1} parent=11 // pred_check
        %p294 = pneg %p64
      $region14: #{policy_network_forward.1} parent=11 // pred_check_branch
        %296 = sbr.rel (%p294) target = $region16
      $region15: #{policy_network_forward.1} parent=11 // pred_region
        _
      $region16: #{policy_network_forward.1} parent=11 // pred_fallthru
        _
      // Predicated region
      $region17: #{policy_network_forward.1} parent=11 // pred_check
        %p297 = pneg %p85
      $region18: #{policy_network_forward.1} parent=11 // pred_check_branch
        %299 = sbr.rel (%p297) target = $region20
      $region19: #{policy_network_forward.1} parent=11 // pred_region
        _
      $region20: #{policy_network_forward.1} parent=11 // pred_fallthru
        _
      // Predicated region
      $region21: #{policy_network_forward.1} parent=11 // pred_check
        %p300 = pneg %p106
      $region22: #{policy_network_forward.1} parent=11 // pred_check_branch
        %302 = sbr.rel (%p300) target = $region24
      $region23: #{policy_network_forward.1} parent=11 // pred_region
        _
      $region24: #{policy_network_forward.1} parent=11 // pred_fallthru
        _
      // Predicated region
      $region25: #{policy_network_forward.1} parent=11 // pred_check
        %p303 = pneg %p127
      $region26: #{policy_network_forward.1} parent=11 // pred_check_branch
        %305 = sbr.rel (%p303) target = $region28
      $region27: #{policy_network_forward.1} parent=11 // pred_region
        _
      $region28: #{policy_network_forward.1} parent=11 // pred_fallthru
        _
      // Predicated region
      $region29: #{policy_network_forward.1} parent=11 // pred_check
        %p306 = pneg %p148
      $region30: #{policy_network_forward.1} parent=11 // pred_check_branch
        %308 = sbr.rel (%p306) target = $region32
      $region31: #{policy_network_forward.1} parent=11 // pred_region
        _
      $region32: #{policy_network_forward.1} parent=11 // pred_fallthru
        _
      // Predicated region
      $region33: #{policy_network_forward.1} parent=11 // pred_check
        %p309 = pneg %p169
      $region34: #{policy_network_forward.1} parent=11 // pred_check_branch
        %311 = sbr.rel (%p309) target = $region36
      $region35: #{policy_network_forward.1} parent=11 // pred_region
        _
      $region36: #{policy_network_forward.1} parent=11 // pred_fallthru
        _
      // Predicated region
      $region37: #{policy_network_forward.1} parent=11 // pred_check
        %p312 = pneg %p190
      $region38: #{policy_network_forward.1} parent=11 // pred_check_branch
        %314 = sbr.rel (%p312) target = $region40
      $region39: #{policy_network_forward.1} parent=11 // pred_region
        _
      $region40: #{policy_network_forward.1} parent=11 // pred_fallthru
        _
      // Predicated region
      $region41: #{policy_network_forward.1} parent=11 // pred_check
        %p315 = pneg %p211
      $region42: #{policy_network_forward.1} parent=11 // pred_check_branch
        %317 = sbr.rel (%p315) target = $region44
      $region43: #{policy_network_forward.1} parent=11 // pred_region
        _
      $region44: #{policy_network_forward.1} parent=11 // pred_fallthru
        _
      // Predicated region
      $region45: #{policy_network_forward.1} parent=11 // pred_check
        %p318 = pneg %p232
      $region46: #{policy_network_forward.1} parent=11 // pred_check_branch
        %320 = sbr.rel (%p318) target = $region48
      $region47: #{policy_network_forward.1} parent=11 // pred_region
        _
      $region48: #{policy_network_forward.1} parent=11 // pred_fallthru
        _
      // Predicated region
      $region49: #{policy_network_forward.1} parent=11 // pred_check
        %p321 = pneg %p253
      $region50: #{policy_network_forward.1} parent=11 // pred_check_branch
        %323 = sbr.rel (%p321) target = $region52
      $region51: #{policy_network_forward.1} parent=11 // pred_region
        _
      $region52: #{policy_network_forward.1} parent=11 // pred_fallthru
        _
    $region12: #{policy_network_forward.1} parent=5 // pred_fallthru
      _
    %p324 = scmp.lt.s32.totalorder %s17, 2
    // Predicated region
    $region53: #{policy_network_forward.1} parent=5 // pred_check
      %p325 = pneg %p324
    $region54: #{policy_network_forward.1} parent=5 // pred_check_branch
      %327 = sbr.rel (%p325) target = $region56
    $region55: #{policy_network_forward.1} parent=5 // pred_region
      // Predicated region
      $region57: #{policy_network_forward.1} parent=55 // pred_check
        %p328 = pneg %p37
      $region58: #{policy_network_forward.1} parent=55 // pred_check_branch
        %330 = sbr.rel (%p328) target = $region60
      $region59: #{policy_network_forward.1} parent=55 // pred_region
        %s331 = smul.u32 16, %s17
        %p332 = scmp.lt.s32.totalorder %s331, 31
        %s333 = scalar_select %p332, %s331, 31
        %s334 = smul.addr %s333, 4
        %s335 = scalar_lea.vmem %s0, %s334
        %s336 = smul.u32 16, %s17
      $region60: #{policy_network_forward.1} parent=55 // pred_fallthru
        _
    $region56: #{policy_network_forward.1} parent=5 // pred_fallthru
      _
    %p337 = scmp.le.s32.totalorder 1, %s17
    %p338 = scmp.lt.s32.totalorder %s17, 3
    %p339 = pnand %p337, %p338
    %p340 = pneg %p339
    // Predicated region
    $region61: #{policy_network_forward.1} parent=5 // pred_check
      _
    $region62: #{policy_network_forward.1} parent=5 // pred_check_branch
      %342 = sbr.rel (%p339) target = $region64
    $region63: #{policy_network_forward.1} parent=5 // pred_region
      %s343 = ssub.s32 %s17, 1
      %s344 = smul.u32 16, %s22
      %p345 = scmp.lt.s32.totalorder %s344, 31
      %s346 = scalar_select %p345, %s344, 31
      %s347 = smul.addr %s346, 4
      %s348 = scalar_lea.vmem %s0, %s347
      %p349 = pneg %p43
      %p350 = pneg %p40
      %p351 = pneg %p64
      %p352 = pneg %p61
      %p353 = pneg %p85
      %p354 = pneg %p82
      %p355 = pneg %p106
      %p356 = pneg %p103
      %p357 = pneg %p127
      %p358 = pneg %p124
      %p359 = pneg %p148
      %p360 = pneg %p145
      %p361 = pneg %p169
      %p362 = pneg %p166
      %p363 = pneg %p190
      %p364 = pneg %p187
      %p365 = pneg %p211
      %p366 = pneg %p208
      %p367 = pneg %p232
      %p368 = pneg %p229
      %p369 = pneg %p253
      %p370 = pneg %p250
      %p371 = pneg %p279
      %p372 = pneg %p276
      %s373 = smul.u32 16, %s22
      %p374 = scmp.lt.s32.totalorder %s373, 31
      %s375 = scalar_select %p374, %s373, 31
      %s376 = smul.addr %s375, 8
      %s377 = scalar_lea.vmem %s11, %s376
      %s378 = smul.u32 16, %s22
      %p379 = scmp.lt.s32.totalorder %s378, 31
      %s380 = scalar_select %p379, %s378, 31
      %s381 = smul.addr %s380, 4
      %s382 = scalar_lea.vmem %s0, %s381
      %s383 = smul.u32 16, %s22
      %s384 = smul.u32 16, %s22
      %p385 = scmp.lt.s32.totalorder %s384, 31
      %s386 = scalar_select %p385, %s384, 31
      %s387 = smul.addr %s386, 8
      %s388 = scalar_lea.vmem %s11, %s387
      %s389 = smul.u32 16, %s22
      %v391 = vld [vmem:[%s382] sm:$0xf]
      %v392 = vld [vmem:[%s382 + $0x4] sm:$0xf]
      %v393 = vld [vmem:[%s382 + $0x8] sm:$0xf]
      %v394 = vld [vmem:[%s382 + $0xc] sm:$0xf]
      %v395 = vld [vmem:[%s382 + $0x10] sm:$0xf]
      %v396 = vld [vmem:[%s382 + $0x14] sm:$0xf]
      %v397 = vld [vmem:[%s382 + $0x18] sm:$0xf]
      %v398 = vld [vmem:[%s382 + $0x1c] sm:$0xf]
      %v399 = vld [vmem:[%s382 + $0x20] sm:$0xf]
      %v400 = vld [vmem:[%s382 + $0x24] sm:$0xf]
      %v401 = vld [vmem:[%s382 + $0x28] sm:$0xf]
      %v402 = vld [vmem:[%s382 + $0x2c] sm:$0xf]
      %v403 = vld [vmem:[%s382 + $0x30] sm:$0xf]
      %v404 = vld [vmem:[%s382 + $0x34] sm:$0xf]
      %v405 = vld [vmem:[%s382 + $0x38] sm:$0xf]
      %v406 = vld [vmem:[%s382 + $0x3c] sm:$0xf]
      %v407 = vld [vmem:[%s1] sm:$0xff]
      %v408 = vld [vmem:[%s1 + $0x8] sm:$0xff]
      %v409 = vld [vmem:[%s2] sm:$0x3]
      %v411 = vlaneseq
      %v412 = vshrl.u32 %v411, 7
      %v413 = vsub.s32 0, %v412
      %v414 = vrot.slane %v409, %v413
      %v415 = vlaneseq
      %v416 = vshrl.u32 %v415, 7
      %v417 = vsub.s32 1, %v416
      %v418 = vrot.slane %v409, %v417
      %v437 = vunpack.c.l.b16 %v391
      %v438 = vunpack.c.l.b16 %v392
      %v439 = vunpack.c.l.b16 %v393
      %v440 = vunpack.c.l.b16 %v394
      %v441 = vunpack.c.l.b16 %v395
      %v442 = vunpack.c.l.b16 %v396
      %v443 = vunpack.c.l.b16 %v397
      %v444 = vunpack.c.l.b16 %v398
      %v445 = vunpack.c.l.b16 %v399
      %v446 = vunpack.c.l.b16 %v400
      %v447 = vunpack.c.l.b16 %v401
      %v448 = vunpack.c.l.b16 %v402
      %v449 = vunpack.c.l.b16 %v403
      %v450 = vunpack.c.l.b16 %v404
      %v451 = vunpack.c.l.b16 %v405
      %v452 = vunpack.c.l.b16 %v406
      %v453 = vpack.c.b16 %v438, %v437
      %v454 = vpack.c.b16 %v440, %v439
      %v455 = vpack.c.b16 %v442, %v441
      %v456 = vpack.c.b16 %v444, %v443
      %v457 = vpack.c.b16 %v446, %v445
      %v458 = vpack.c.b16 %v448, %v447
      %v459 = vpack.c.b16 %v450, %v449
      %v460 = vpack.c.b16 %v452, %v451
      %v463 = vunpack.c.l.b16 %v407
      %v464 = vunpack.c.h.b16 %v407
      %v465 = vunpack.c.l.b16 %v408
      %v466 = vunpack.c.h.b16 %v408
      %v467 = vpack.c.b16 %v465, %v463
      %v468 = vpack.c.b16 %v466, %v464
      %vm471 = vcmask 130048
      %v473 = vsel %vm471, %v453, 0
      %v476 = vsel %vm471, %v454, 0
      %v479 = vsel %vm471, %v455, 0
      %v482 = vsel %vm471, %v456, 0
      %v485 = vsel %vm471, %v457, 0
      %v488 = vsel %vm471, %v458, 0
      %v491 = vsel %vm471, %v459, 0
      %v494 = vsel %vm471, %v460, 0
      %496 = vmatprep.subr.bf16.mxu0 %v468
      %497 = vmatpush1.bf16.msra.mxu0 %v467
      %498 = vmatprep.subr.bf16.mxu0 0
      %499 = vmatpush1.bf16.msra.mxu0 0
      %500 = vmatprep.subr.bf16.mxu0 0
      %501 = vmatpush1.bf16.msra.mxu0 0
      %502 = vmatprep.subr.bf16.mxu0 0
      %503 = vmatpush1.bf16.msra.mxu0 0
      %504 = vmatprep.subr.bf16.mxu0 0
      %505 = vmatpush1.bf16.msra.mxu0 0
      %506 = vmatprep.subr.bf16.mxu0 0
      %507 = vmatpush1.bf16.msra.mxu0 0
      %508 = vmatprep.subr.bf16.mxu0 0
      %509 = vmatpush1.bf16.msra.mxu0 0
      %510 = vmatprep.subr.bf16.mxu0 0
      %511 = vmatpush1.bf16.msra.mxu0 0
      %512 = vmatprep.subr.bf16.mxu0 0
      %513 = vmatpush1.bf16.msra.mxu0 0
      %514 = vmatprep.subr.bf16.mxu0 0
      %515 = vmatpush1.bf16.msra.mxu0 0
      %516 = vmatprep.subr.bf16.mxu0 0
      %517 = vmatpush1.bf16.msra.mxu0 0
      %518 = vmatprep.subr.bf16.mxu0 0
      %519 = vmatpush1.bf16.msra.mxu0 0
      %520 = vmatprep.subr.bf16.mxu0 0
      %521 = vmatpush1.bf16.msra.mxu0 0
      %522 = vmatprep.subr.bf16.mxu0 0
      %523 = vmatpush1.bf16.msra.mxu0 0
      %524 = vmatprep.subr.bf16.mxu0 0
      %525 = vmatpush1.bf16.msra.mxu0 0
      %526 = vmatprep.subr.bf16.mxu0 0
      %527 = vmatpush1.bf16.msra.mxu0 0
      %528 = vmatprep.mubr.bf16.mxu0 0
      %529 = vmatmul.mubr.bf16.gmra.mrb[0].mxu0 %v473
      %v530 = vpop.f32.mrb[0].mxu0
      %v531 = vadd.f32 %v414, %v530
      %v532 = vpop.f32.mrb[0].mxu0
      %v533 = vadd.f32 %v418, %v532
      %v534 = vpop.f32.mrb[0].mxu0
      %v535 = vadd.f32 %v414, %v534
      %v536 = vpop.f32.mrb[0].mxu0
      %v537 = vadd.f32 %v418, %v536
      %538 = vmatprep.mubr.bf16.mxu0 0
      %539 = vmatmul.mubr.bf16.gmra.mrb[0].mxu0 %v476
      %v540 = vpop.f32.mrb[0].mxu0
      %v541 = vadd.f32 %v414, %v540
      %v542 = vpop.f32.mrb[0].mxu0
      %v543 = vadd.f32 %v418, %v542
      %v544 = vpop.f32.mrb[0].mxu0
      %v545 = vadd.f32 %v414, %v544
      %v546 = vpop.f32.mrb[0].mxu0
      %v547 = vadd.f32 %v418, %v546
      %548 = vmatprep.mubr.bf16.mxu0 0
      %549 = vmatmul.mubr.bf16.gmra.mrb[0].mxu0 %v479
      %v550 = vpop.f32.mrb[0].mxu0
      %v551 = vadd.f32 %v414, %v550
      %v552 = vpop.f32.mrb[0].mxu0
      %v553 = vadd.f32 %v418, %v552
      %v554 = vpop.f32.mrb[0].mxu0
      %v555 = vadd.f32 %v414, %v554
      %v556 = vpop.f32.mrb[0].mxu0
      %v557 = vadd.f32 %v418, %v556
      %558 = vmatprep.mubr.bf16.mxu0 0
      %559 = vmatmul.mubr.bf16.gmra.mrb[0].mxu0 %v482
      %v560 = vpop.f32.mrb[0].mxu0
      %v561 = vadd.f32 %v414, %v560
      %v562 = vpop.f32.mrb[0].mxu0
      %v563 = vadd.f32 %v418, %v562
      %v564 = vpop.f32.mrb[0].mxu0
      %v565 = vadd.f32 %v414, %v564
      %v566 = vpop.f32.mrb[0].mxu0
      %v567 = vadd.f32 %v418, %v566
      %568 = vmatprep.mubr.bf16.mxu0 0
      %569 = vmatmul.mubr.bf16.gmra.mrb[0].mxu0 %v485
      %v570 = vpop.f32.mrb[0].mxu0
      %v571 = vadd.f32 %v414, %v570
      %v572 = vpop.f32.mrb[0].mxu0
      %v573 = vadd.f32 %v418, %v572
      %v574 = vpop.f32.mrb[0].mxu0
      %v575 = vadd.f32 %v414, %v574
      %v576 = vpop.f32.mrb[0].mxu0
      %v577 = vadd.f32 %v418, %v576
      %578 = vmatprep.mubr.bf16.mxu0 0
      %579 = vmatmul.mubr.bf16.gmra.mrb[0].mxu0 %v488
      %v580 = vpop.f32.mrb[0].mxu0
      %v581 = vadd.f32 %v414, %v580
      %v582 = vpop.f32.mrb[0].mxu0
      %v583 = vadd.f32 %v418, %v582
      %v584 = vpop.f32.mrb[0].mxu0
      %v585 = vadd.f32 %v414, %v584
      %v586 = vpop.f32.mrb[0].mxu0
      %v587 = vadd.f32 %v418, %v586
      %588 = vmatprep.mubr.bf16.mxu0 0
      %589 = vmatmul.mubr.bf16.gmra.mrb[0].mxu0 %v491
      %v590 = vpop.f32.mrb[0].mxu0
      %v591 = vadd.f32 %v414, %v590
      %v592 = vpop.f32.mrb[0].mxu0
      %v593 = vadd.f32 %v418, %v592
      %v594 = vpop.f32.mrb[0].mxu0
      %v595 = vadd.f32 %v414, %v594
      %v596 = vpop.f32.mrb[0].mxu0
      %v597 = vadd.f32 %v418, %v596
      %598 = vmatprep.mubr.bf16.mxu0 0
      %599 = vmatmul.mubr.bf16.gmra.mrb[0].mxu0 %v494
      %v600 = vpop.f32.mrb[0].mxu0
      %v601 = vadd.f32 %v414, %v600
      %v602 = vpop.f32.mrb[0].mxu0
      %v603 = vadd.f32 %v418, %v602
      %v604 = vpop.f32.mrb[0].mxu0
      %v605 = vadd.f32 %v414, %v604
      %v606 = vpop.f32.mrb[0].mxu0
      %v607 = vadd.f32 %v418, %v606
      %608 = vdwg.mxu0
      %v609 = vld [vmem:[%s3] sm:$0x3]
      %v610 = vld [vmem:[%s4] sm:$0x3]
      %v611 = vadd.f32 %v531, %v533
      %612 = vadd.xlane.f32.xlu0 %v611
      %v613 = vpop.xlane.xlu0 %612
      %v614 = vadd.f32 %v535, %v537
      %615 = vadd.xlane.f32.xlu0 %v614
      %v616 = vpop.xlane.xlu0 %615
      %v617 = vadd.f32 %v541, %v543
      %618 = vadd.xlane.f32.xlu0 %v617
      %v619 = vpop.xlane.xlu0 %618
      %v620 = vadd.f32 %v545, %v547
      %621 = vadd.xlane.f32.xlu0 %v620
      %v622 = vpop.xlane.xlu0 %621
      %v623 = vadd.f32 %v551, %v553
      %624 = vadd.xlane.f32.xlu0 %v623
      %v625 = vpop.xlane.xlu0 %624
      %v626 = vadd.f32 %v555, %v557
      %627 = vadd.xlane.f32.xlu0 %v626
      %v628 = vpop.xlane.xlu0 %627
      %v629 = vadd.f32 %v561, %v563
      %630 = vadd.xlane.f32.xlu0 %v629
      %v631 = vpop.xlane.xlu0 %630
      %v632 = vadd.f32 %v565, %v567
      %633 = vadd.xlane.f32.xlu0 %v632
      %v634 = vpop.xlane.xlu0 %633
      %v635 = vadd.f32 %v571, %v573
      %636 = vadd.xlane.f32.xlu0 %v635
      %v637 = vpop.xlane.xlu0 %636
      %v638 = vadd.f32 %v575, %v577
      %639 = vadd.xlane.f32.xlu0 %v638
      %v640 = vpop.xlane.xlu0 %639
      %v641 = vadd.f32 %v581, %v583
      %642 = vadd.xlane.f32.xlu0 %v641
      %v643 = vpop.xlane.xlu0 %642
      %v644 = vadd.f32 %v585, %v587
      %645 = vadd.xlane.f32.xlu0 %v644
      %v646 = vpop.xlane.xlu0 %645
      %v647 = vadd.f32 %v591, %v593
      %648 = vadd.xlane.f32.xlu0 %v647
      %v649 = vpop.xlane.xlu0 %648
      %v650 = vadd.f32 %v595, %v597
      %651 = vadd.xlane.f32.xlu0 %v650
      %v652 = vpop.xlane.xlu0 %651
      %v653 = vadd.f32 %v601, %v603
      %654 = vadd.xlane.f32.xlu0 %v653
      %v655 = vpop.xlane.xlu0 %654
      %v656 = vadd.f32 %v605, %v607
      %657 = vadd.xlane.f32.xlu0 %v656
      %v658 = vpop.xlane.xlu0 %657
      %v659 = vrcp.pop 256.0
      %v660 = vmul.f32 %v613, %v659
      %v661 = vmul.f32 %v616, %v659
      %v662 = vmul.f32 %v619, %v659
      %v663 = vmul.f32 %v622, %v659
      %v664 = vmul.f32 %v625, %v659
      %v665 = vmul.f32 %v628, %v659
      %v666 = vmul.f32 %v631, %v659
      %v667 = vmul.f32 %v634, %v659
      %v668 = vmul.f32 %v637, %v659
      %v669 = vmul.f32 %v640, %v659
      %v670 = vmul.f32 %v643, %v659
      %v671 = vmul.f32 %v646, %v659
      %v672 = vmul.f32 %v649, %v659
      %v673 = vmul.f32 %v652, %v659
      %v674 = vmul.f32 %v655, %v659
      %v675 = vmul.f32 %v658, %v659
      %v676 = vmul.f32 %v531, %v531
      %v677 = vmul.f32 %v533, %v533
      %v678 = vmul.f32 %v535, %v535
      %v679 = vmul.f32 %v537, %v537
      %v680 = vmul.f32 %v541, %v541
      %v681 = vmul.f32 %v543, %v543
      %v682 = vmul.f32 %v545, %v545
      %v683 = vmul.f32 %v547, %v547
      %v684 = vmul.f32 %v551, %v551
      %v685 = vmul.f32 %v553, %v553
      %v686 = vmul.f32 %v555, %v555
      %v687 = vmul.f32 %v557, %v557
      %v688 = vmul.f32 %v561, %v561
      %v689 = vmul.f32 %v563, %v563
      %v690 = vmul.f32 %v565, %v565
      %v691 = vmul.f32 %v567, %v567
      %v692 = vmul.f32 %v571, %v571
      %v693 = vmul.f32 %v573, %v573
      %v694 = vmul.f32 %v575, %v575
      %v695 = vmul.f32 %v577, %v577
      %v696 = vmul.f32 %v581, %v581
      %v697 = vmul.f32 %v583, %v583
      %v698 = vmul.f32 %v585, %v585
      %v699 = vmul.f32 %v587, %v587
      %v700 = vmul.f32 %v591, %v591
      %v701 = vmul.f32 %v593, %v593
      %v702 = vmul.f32 %v595, %v595
      %v703 = vmul.f32 %v597, %v597
      %v704 = vmul.f32 %v601, %v601
      %v705 = vmul.f32 %v603, %v603
      %v706 = vmul.f32 %v605, %v605
      %v707 = vmul.f32 %v607, %v607
      %v708 = vadd.f32 %v676, %v677
      %709 = vadd.xlane.f32.xlu0 %v708
      %v710 = vpop.xlane.xlu0 %709
      %v711 = vadd.f32 %v678, %v679
      %712 = vadd.xlane.f32.xlu0 %v711
      %v713 = vpop.xlane.xlu0 %712
      %v714 = vadd.f32 %v680, %v681
      %715 = vadd.xlane.f32.xlu0 %v714
      %v716 = vpop.xlane.xlu0 %715
      %v717 = vadd.f32 %v682, %v683
      %718 = vadd.xlane.f32.xlu0 %v717
      %v719 = vpop.xlane.xlu0 %718
      %v720 = vadd.f32 %v684, %v685
      %721 = vadd.xlane.f32.xlu0 %v720
      %v722 = vpop.xlane.xlu0 %721
      %v723 = vadd.f32 %v686, %v687
      %724 = vadd.xlane.f32.xlu0 %v723
      %v725 = vpop.xlane.xlu0 %724
      %v726 = vadd.f32 %v688, %v689
      %727 = vadd.xlane.f32.xlu0 %v726
      %v728 = vpop.xlane.xlu0 %727
      %v729 = vadd.f32 %v690, %v691
      %730 = vadd.xlane.f32.xlu0 %v729
      %v731 = vpop.xlane.xlu0 %730
      %v732 = vadd.f32 %v692, %v693
      %733 = vadd.xlane.f32.xlu0 %v732
      %v734 = vpop.xlane.xlu0 %733
      %v735 = vadd.f32 %v694, %v695
      %736 = vadd.xlane.f32.xlu0 %v735
      %v737 = vpop.xlane.xlu0 %736
      %v738 = vadd.f32 %v696, %v697
      %739 = vadd.xlane.f32.xlu0 %v738
      %v740 = vpop.xlane.xlu0 %739
      %v741 = vadd.f32 %v698, %v699
      %742 = vadd.xlane.f32.xlu0 %v741
      %v743 = vpop.xlane.xlu0 %742
      %v744 = vadd.f32 %v700, %v701
      %745 = vadd.xlane.f32.xlu0 %v744
      %v746 = vpop.xlane.xlu0 %745
      %v747 = vadd.f32 %v702, %v703
      %748 = vadd.xlane.f32.xlu0 %v747
      %v749 = vpop.xlane.xlu0 %748
      %v750 = vadd.f32 %v704, %v705
      %751 = vadd.xlane.f32.xlu0 %v750
      %v752 = vpop.xlane.xlu0 %751
      %v753 = vadd.f32 %v706, %v707
      %754 = vadd.xlane.f32.xlu0 %v753
      %v755 = vpop.xlane.xlu0 %754
      %v756 = vmul.f32 %v710, %v659
      %v757 = vmul.f32 %v713, %v659
      %v758 = vmul.f32 %v716, %v659
      %v759 = vmul.f32 %v719, %v659
      %v760 = vmul.f32 %v722, %v659
      %v761 = vmul.f32 %v725, %v659
      %v762 = vmul.f32 %v728, %v659
      %v763 = vmul.f32 %v731, %v659
      %v764 = vmul.f32 %v734, %v659
      %v765 = vmul.f32 %v737, %v659
      %v766 = vmul.f32 %v740, %v659
      %v767 = vmul.f32 %v743, %v659
      %v768 = vmul.f32 %v746, %v659
      %v769 = vmul.f32 %v749, %v659
      %v770 = vmul.f32 %v752, %v659
      %v771 = vmul.f32 %v755, %v659
      %v772 = vmul.f32 %v660, %v660
      %v773 = vmul.f32 %v661, %v661
      %v774 = vmul.f32 %v662, %v662
      %v775 = vmul.f32 %v663, %v663
      %v776 = vmul.f32 %v664, %v664
      %v777 = vmul.f32 %v665, %v665
      %v778 = vmul.f32 %v666, %v666
      %v779 = vmul.f32 %v667, %v667
      %v780 = vmul.f32 %v668, %v668
      %v781 = vmul.f32 %v669, %v669
      %v782 = vmul.f32 %v670, %v670
      %v783 = vmul.f32 %v671, %v671
      %v784 = vmul.f32 %v672, %v672
      %v785 = vmul.f32 %v673, %v673
      %v786 = vmul.f32 %v674, %v674
      %v787 = vmul.f32 %v675, %v675
      %v788 = vsub.f32 %v756, %v772
      %v789 = vsub.f32 %v757, %v773
      %v790 = vsub.f32 %v758, %v774
      %v791 = vsub.f32 %v759, %v775
      %v792 = vsub.f32 %v760, %v776
      %v793 = vsub.f32 %v761, %v777
      %v794 = vsub.f32 %v762, %v778
      %v795 = vsub.f32 %v763, %v779
      %v796 = vsub.f32 %v764, %v780
      %v797 = vsub.f32 %v765, %v781
      %v798 = vsub.f32 %v766, %v782
      %v799 = vsub.f32 %v767, %v783
      %v800 = vsub.f32 %v768, %v784
      %v801 = vsub.f32 %v769, %v785
      %v802 = vsub.f32 %v770, %v786
      %v803 = vsub.f32 %v771, %v787
      %v804 = vmax.f32 %v788, 0.0
      %v805 = vmax.f32 %v789, 0.0
      %v806 = vmax.f32 %v790, 0.0
      %v807 = vmax.f32 %v791, 0.0
      %v808 = vmax.f32 %v792, 0.0
      %v809 = vmax.f32 %v793, 0.0
      %v810 = vmax.f32 %v794, 0.0
      %v811 = vmax.f32 %v795, 0.0
      %v812 = vmax.f32 %v796, 0.0
      %v813 = vmax.f32 %v797, 0.0
      %v814 = vmax.f32 %v798, 0.0
      %v815 = vmax.f32 %v799, 0.0
      %v816 = vmax.f32 %v800, 0.0
      %v817 = vmax.f32 %v801, 0.0
      %v818 = vmax.f32 %v802, 0.0
      %v819 = vmax.f32 %v803, 0.0
      %v820 = vadd.f32 %v804, 1e-05
      %v821 = vadd.f32 %v805, 1e-05
      %v822 = vadd.f32 %v806, 1e-05
      %v823 = vadd.f32 %v807, 1e-05
      %v824 = vadd.f32 %v808, 1e-05
      %v825 = vadd.f32 %v809, 1e-05
      %v826 = vadd.f32 %v810, 1e-05
      %v827 = vadd.f32 %v811, 1e-05
      %v828 = vadd.f32 %v812, 1e-05
      %v829 = vadd.f32 %v813, 1e-05
      %v830 = vadd.f32 %v814, 1e-05
      %v831 = vadd.f32 %v815, 1e-05
      %v832 = vadd.f32 %v816, 1e-05
      %v833 = vadd.f32 %v817, 1e-05
      %v834 = vadd.f32 %v818, 1e-05
      %v835 = vadd.f32 %v819, 1e-05
      %v836 = vrsqrt.pop %v820
      %v837 = vrsqrt.pop %v821
      %v838 = vrsqrt.pop %v822
      %v839 = vrsqrt.pop %v823
      %v840 = vrsqrt.pop %v824
      %v841 = vrsqrt.pop %v825
      %v842 = vrsqrt.pop %v826
      %v843 = vrsqrt.pop %v827
      %v844 = vrsqrt.pop %v828
      %v845 = vrsqrt.pop %v829
      %v846 = vrsqrt.pop %v830
      %v847 = vrsqrt.pop %v831
      %v848 = vrsqrt.pop %v832
      %v849 = vrsqrt.pop %v833
      %v850 = vrsqrt.pop %v834
      %v851 = vrsqrt.pop %v835
      %v852 = vsub.f32 %v531, %v660
      %v853 = vsub.f32 %v533, %v660
      %v854 = vsub.f32 %v535, %v661
      %v855 = vsub.f32 %v537, %v661
      %v856 = vsub.f32 %v541, %v662
      %v857 = vsub.f32 %v543, %v662
      %v858 = vsub.f32 %v545, %v663
      %v859 = vsub.f32 %v547, %v663
      %v860 = vsub.f32 %v551, %v664
      %v861 = vsub.f32 %v553, %v664
      %v862 = vsub.f32 %v555, %v665
      %v863 = vsub.f32 %v557, %v665
      %v864 = vsub.f32 %v561, %v666
      %v865 = vsub.f32 %v563, %v666
      %v866 = vsub.f32 %v565, %v667
      %v867 = vsub.f32 %v567, %v667
      %v868 = vsub.f32 %v571, %v668
      %v869 = vsub.f32 %v573, %v668
      %v870 = vsub.f32 %v575, %v669
      %v871 = vsub.f32 %v577, %v669
      %v872 = vsub.f32 %v581, %v670
      %v873 = vsub.f32 %v583, %v670
      %v874 = vsub.f32 %v585, %v671
      %v875 = vsub.f32 %v587, %v671
      %v876 = vsub.f32 %v591, %v672
      %v877 = vsub.f32 %v593, %v672
      %v878 = vsub.f32 %v595, %v673
      %v879 = vsub.f32 %v597, %v673
      %v880 = vsub.f32 %v601, %v674
      %v881 = vsub.f32 %v603, %v674
      %v882 = vsub.f32 %v605, %v675
      %v883 = vsub.f32 %v607, %v675
      %v884 = vmul.f32 %v852, %v836
      %v885 = vmul.f32 %v853, %v836
      %v886 = vmul.f32 %v854, %v837
      %v887 = vmul.f32 %v855, %v837
      %v888 = vmul.f32 %v856, %v838
      %v889 = vmul.f32 %v857, %v838
      %v890 = vmul.f32 %v858, %v839
      %v891 = vmul.f32 %v859, %v839
      %v892 = vmul.f32 %v860, %v840
      %v893 = vmul.f32 %v861, %v840
      %v894 = vmul.f32 %v862, %v841
      %v895 = vmul.f32 %v863, %v841
      %v896 = vmul.f32 %v864, %v842
      %v897 = vmul.f32 %v865, %v842
      %v898 = vmul.f32 %v866, %v843
      %v899 = vmul.f32 %v867, %v843
      %v900 = vmul.f32 %v868, %v844
      %v901 = vmul.f32 %v869, %v844
      %v902 = vmul.f32 %v870, %v845
      %v903 = vmul.f32 %v871, %v845
      %v904 = vmul.f32 %v872, %v846
      %v905 = vmul.f32 %v873, %v846
      %v906 = vmul.f32 %v874, %v847
      %v907 = vmul.f32 %v875, %v847
      %v908 = vmul.f32 %v876, %v848
      %v909 = vmul.f32 %v877, %v848
      %v910 = vmul.f32 %v878, %v849
      %v911 = vmul.f32 %v879, %v849
      %v912 = vmul.f32 %v880, %v850
      %v913 = vmul.f32 %v881, %v850
      %v914 = vmul.f32 %v882, %v851
      %v915 = vmul.f32 %v883, %v851
      %v917 = vlaneseq
      %v918 = vshrl.u32 %v917, 7
      %v919 = vsub.s32 0, %v918
      %v920 = vrot.slane %v609, %v919
      %v921 = vlaneseq
      %v922 = vshrl.u32 %v921, 7
      %v923 = vsub.s32 1, %v922
      %v924 = vrot.slane %v609, %v923
      %v927 = vmul.f32 %v884, %v920
      %v928 = vmul.f32 %v885, %v924
      %v929 = vmul.f32 %v886, %v920
      %v930 = vmul.f32 %v887, %v924
      %v931 = vmul.f32 %v888, %v920
      %v932 = vmul.f32 %v889, %v924
      %v933 = vmul.f32 %v890, %v920
      %v934 = vmul.f32 %v891, %v924
      %v935 = vmul.f32 %v892, %v920
      %v936 = vmul.f32 %v893, %v924
      %v937 = vmul.f32 %v894, %v920
      %v938 = vmul.f32 %v895, %v924
      %v939 = vmul.f32 %v896, %v920
      %v940 = vmul.f32 %v897, %v924
      %v941 = vmul.f32 %v898, %v920
      %v942 = vmul.f32 %v899, %v924
      %v943 = vmul.f32 %v900, %v920
      %v944 = vmul.f32 %v901, %v924
      %v945 = vmul.f32 %v902, %v920
      %v946 = vmul.f32 %v903, %v924
      %v947 = vmul.f32 %v904, %v920
      %v948 = vmul.f32 %v905, %v924
      %v949 = vmul.f32 %v906, %v920
      %v950 = vmul.f32 %v907, %v924
      %v951 = vmul.f32 %v908, %v920
      %v952 = vmul.f32 %v909, %v924
      %v953 = vmul.f32 %v910, %v920
      %v954 = vmul.f32 %v911, %v924
      %v955 = vmul.f32 %v912, %v920
      %v956 = vmul.f32 %v913, %v924
      %v957 = vmul.f32 %v914, %v920
      %v958 = vmul.f32 %v915, %v924
      %v960 = vlaneseq
      %v961 = vshrl.u32 %v960, 7
      %v962 = vsub.s32 0, %v961
      %v963 = vrot.slane %v610, %v962
      %v964 = vlaneseq
      %v965 = vshrl.u32 %v964, 7
      %v966 = vsub.s32 1, %v965
      %v967 = vrot.slane %v610, %v966
      %v970 = vadd.f32 %v927, %v963
      %v971 = vadd.f32 %v928, %v967
      %v972 = vadd.f32 %v929, %v963
      %v973 = vadd.f32 %v930, %v967
      %v974 = vadd.f32 %v931, %v963
      %v975 = vadd.f32 %v932, %v967
      %v976 = vadd.f32 %v933, %v963
      %v977 = vadd.f32 %v934, %v967
      %v978 = vadd.f32 %v935, %v963
      %v979 = vadd.f32 %v936, %v967
      %v980 = vadd.f32 %v937, %v963
      %v981 = vadd.f32 %v938, %v967
      %v982 = vadd.f32 %v939, %v963
      %v983 = vadd.f32 %v940, %v967
      %v984 = vadd.f32 %v941, %v963
      %v985 = vadd.f32 %v942, %v967
      %v986 = vadd.f32 %v943, %v963
      %v987 = vadd.f32 %v944, %v967
      %v988 = vadd.f32 %v945, %v963
      %v989 = vadd.f32 %v946, %v967
      %v990 = vadd.f32 %v947, %v963
      %v991 = vadd.f32 %v948, %v967
      %v992 = vadd.f32 %v949, %v963
      %v993 = vadd.f32 %v950, %v967
      %v994 = vadd.f32 %v951, %v963
      %v995 = vadd.f32 %v952, %v967
      %v996 = vadd.f32 %v953, %v963
      %v997 = vadd.f32 %v954, %v967
      %v998 = vadd.f32 %v955, %v963
      %v999 = vadd.f32 %v956, %v967
      %v1000 = vadd.f32 %v957, %v963
      %v1001 = vadd.f32 %v958, %v967
      %v1002 = vmax.f32 %v970, 0.0
      %v1003 = vmax.f32 %v971, 0.0
      %v1004 = vmax.f32 %v972, 0.0
      %v1005 = vmax.f32 %v973, 0.0
      %v1006 = vmax.f32 %v974, 0.0
      %v1007 = vmax.f32 %v975, 0.0
      %v1008 = vmax.f32 %v976, 0.0
      %v1009 = vmax.f32 %v977, 0.0
      %v1010 = vmax.f32 %v978, 0.0
      %v1011 = vmax.f32 %v979, 0.0
      %v1012 = vmax.f32 %v980, 0.0
      %v1013 = vmax.f32 %v981, 0.0
      %v1014 = vmax.f32 %v982, 0.0
      %v1015 = vmax.f32 %v983, 0.0
      %v1016 = vmax.f32 %v984, 0.0
      %v1017 = vmax.f32 %v985, 0.0
      %v1018 = vmax.f32 %v986, 0.0
      %v1019 = vmax.f32 %v987, 0.0
      %v1020 = vmax.f32 %v988, 0.0
      %v1021 = vmax.f32 %v989, 0.0
      %v1022 = vmax.f32 %v990, 0.0
      %v1023 = vmax.f32 %v991, 0.0
      %v1024 = vmax.f32 %v992, 0.0
      %v1025 = vmax.f32 %v993, 0.0
      %v1026 = vmax.f32 %v994, 0.0
      %v1027 = vmax.f32 %v995, 0.0
      %v1028 = vmax.f32 %v996, 0.0
      %v1029 = vmax.f32 %v997, 0.0
      %v1030 = vmax.f32 %v998, 0.0
      %v1031 = vmax.f32 %v999, 0.0
      %v1032 = vmax.f32 %v1000, 0.0
      %v1033 = vmax.f32 %v1001, 0.0
      %v1034 = vpack.c.bf16 %v1004, %v1002
      %v1035 = vpack.c.bf16 %v1005, %v1003
      %v1036 = vpack.c.bf16 %v1008, %v1006
      %v1037 = vpack.c.bf16 %v1009, %v1007
      %v1038 = vpack.c.bf16 %v1012, %v1010
      %v1039 = vpack.c.bf16 %v1013, %v1011
      %v1040 = vpack.c.bf16 %v1016, %v1014
      %v1041 = vpack.c.bf16 %v1017, %v1015
      %v1042 = vpack.c.bf16 %v1020, %v1018
      %v1043 = vpack.c.bf16 %v1021, %v1019
      %v1044 = vpack.c.bf16 %v1024, %v1022
      %v1045 = vpack.c.bf16 %v1025, %v1023
      %v1046 = vpack.c.bf16 %v1028, %v1026
      %v1047 = vpack.c.bf16 %v1029, %v1027
      %v1048 = vpack.c.bf16 %v1032, %v1030
      %v1049 = vpack.c.bf16 %v1033, %v1031
      %v1050 = vld [vmem:[%s5] sm:$0xf]
      %v1051 = vld [vmem:[%s5 + $0x4] sm:$0xf]
      %v1052 = vld [vmem:[%s5 + $0x8] sm:$0xf]
      %v1053 = vld [vmem:[%s5 + $0xc] sm:$0xf]
      %v1054 = vld [vmem:[%s5 + $0x10] sm:$0xf]
      %v1055 = vld [vmem:[%s5 + $0x14] sm:$0xf]
      %v1056 = vld [vmem:[%s5 + $0x18] sm:$0xf]
      %v1057 = vld [vmem:[%s5 + $0x1c] sm:$0xf]
      %v1058 = vld [vmem:[%s5 + $0x20] sm:$0xf]
      %v1059 = vld [vmem:[%s5 + $0x24] sm:$0xf]
      %v1060 = vld [vmem:[%s5 + $0x28] sm:$0xf]
      %v1061 = vld [vmem:[%s5 + $0x2c] sm:$0xf]
      %v1062 = vld [vmem:[%s5 + $0x30] sm:$0xf]
      %v1063 = vld [vmem:[%s5 + $0x34] sm:$0xf]
      %v1064 = vld [vmem:[%s5 + $0x38] sm:$0xf]
      %v1065 = vld [vmem:[%s5 + $0x3c] sm:$0xf]
      %v1066 = vld [vmem:[%s5 + $0x40] sm:$0xf]
      %v1067 = vld [vmem:[%s5 + $0x44] sm:$0xf]
      %v1068 = vld [vmem:[%s5 + $0x48] sm:$0xf]
      %v1069 = vld [vmem:[%s5 + $0x4c] sm:$0xf]
      %v1070 = vld [vmem:[%s5 + $0x50] sm:$0xf]
      %v1071 = vld [vmem:[%s5 + $0x54] sm:$0xf]
      %v1072 = vld [vmem:[%s5 + $0x58] sm:$0xf]
      %v1073 = vld [vmem:[%s5 + $0x5c] sm:$0xf]
      %v1074 = vld [vmem:[%s5 + $0x60] sm:$0xf]
      %v1075 = vld [vmem:[%s5 + $0x64] sm:$0xf]
      %v1076 = vld [vmem:[%s5 + $0x68] sm:$0xf]
      %v1077 = vld [vmem:[%s5 + $0x6c] sm:$0xf]
      %v1078 = vld [vmem:[%s5 + $0x70] sm:$0xf]
      %v1079 = vld [vmem:[%s5 + $0x74] sm:$0xf]
      %v1080 = vld [vmem:[%s5 + $0x78] sm:$0xf]
      %v1081 = vld [vmem:[%s5 + $0x7c] sm:$0xf]
      %v1082 = vld [vmem:[%s6] sm:$0x1]
      %v1084 = vlaneseq
      %v1085 = vshrl.u32 %v1084, 7
      %v1086 = vsub.s32 0, %v1085
      %v1087 = vrot.slane %v1082, %v1086
      %v1121 = vunpack.c.l.b16 %v1050
      %v1122 = vunpack.c.l.b16 %v1051
      %v1123 = vunpack.c.l.b16 %v1052
      %v1124 = vunpack.c.l.b16 %v1053
      %v1125 = vunpack.c.l.b16 %v1054
      %v1126 = vunpack.c.l.b16 %v1055
      %v1127 = vunpack.c.l.b16 %v1056
      %v1128 = vunpack.c.l.b16 %v1057
      %v1129 = vunpack.c.l.b16 %v1058
      %v1130 = vunpack.c.l.b16 %v1059
      %v1131 = vunpack.c.l.b16 %v1060
      %v1132 = vunpack.c.l.b16 %v1061
      %v1133 = vunpack.c.l.b16 %v1062
      %v1134 = vunpack.c.l.b16 %v1063
      %v1135 = vunpack.c.l.b16 %v1064
      %v1136 = vunpack.c.l.b16 %v1065
      %v1137 = vunpack.c.l.b16 %v1066
      %v1138 = vunpack.c.l.b16 %v1067
      %v1139 = vunpack.c.l.b16 %v1068
      %v1140 = vunpack.c.l.b16 %v1069
      %v1141 = vunpack.c.l.b16 %v1070
      %v1142 = vunpack.c.l.b16 %v1071
      %v1143 = vunpack.c.l.b16 %v1072
      %v1144 = vunpack.c.l.b16 %v1073
      %v1145 = vunpack.c.l.b16 %v1074
      %v1146 = vunpack.c.l.b16 %v1075
      %v1147 = vunpack.c.l.b16 %v1076
      %v1148 = vunpack.c.l.b16 %v1077
      %v1149 = vunpack.c.l.b16 %v1078
      %v1150 = vunpack.c.l.b16 %v1079
      %v1151 = vunpack.c.l.b16 %v1080
      %v1152 = vunpack.c.l.b16 %v1081
      %v1153 = vpack.c.b16 %v1122, %v1121
      %v1154 = vpack.c.b16 %v1124, %v1123
      %v1155 = vpack.c.b16 %v1126, %v1125
      %v1156 = vpack.c.b16 %v1128, %v1127
      %v1157 = vpack.c.b16 %v1130, %v1129
      %v1158 = vpack.c.b16 %v1132, %v1131
      %v1159 = vpack.c.b16 %v1134, %v1133
      %v1160 = vpack.c.b16 %v1136, %v1135
      %v1161 = vpack.c.b16 %v1138, %v1137
      %v1162 = vpack.c.b16 %v1140, %v1139
      %v1163 = vpack.c.b16 %v1142, %v1141
      %v1164 = vpack.c.b16 %v1144, %v1143
      %v1165 = vpack.c.b16 %v1146, %v1145
      %v1166 = vpack.c.b16 %v1148, %v1147
      %v1167 = vpack.c.b16 %v1150, %v1149
      %v1168 = vpack.c.b16 %v1152, %v1151
      %1185 = vmatprep.subr.bf16.mxu0 0
      %1186 = vmatpush1.bf16.msra.mxu0 %v1153
      %1187 = vmatprep.subr.bf16.mxu0 0
      %1188 = vmatpush1.bf16.msra.mxu0 %v1154
      %1189 = vmatprep.subr.bf16.mxu0 0
      %1190 = vmatpush1.bf16.msra.mxu0 %v1155
      %1191 = vmatprep.subr.bf16.mxu0 0
      %1192 = vmatpush1.bf16.msra.mxu0 %v1156
      %1193 = vmatprep.subr.bf16.mxu0 0
      %1194 = vmatpush1.bf16.msra.mxu0 %v1157
      %1195 = vmatprep.subr.bf16.mxu0 0
      %1196 = vmatpush1.bf16.msra.mxu0 %v1158
      %1197 = vmatprep.subr.bf16.mxu0 0
      %1198 = vmatpush1.bf16.msra.mxu0 %v1159
      %1199 = vmatprep.subr.bf16.mxu0 0
      %1200 = vmatpush1.bf16.msra.mxu0 %v1160
      %1201 = vmatprep.subr.bf16.mxu0 0
      %1202 = vmatpush1.bf16.msra.mxu0 %v1161
      %1203 = vmatprep.subr.bf16.mxu0 0
      %1204 = vmatpush1.bf16.msra.mxu0 %v1162
      %1205 = vmatprep.subr.bf16.mxu0 0
      %1206 = vmatpush1.bf16.msra.mxu0 %v1163
      %1207 = vmatprep.subr.bf16.mxu0 0
      %1208 = vmatpush1.bf16.msra.mxu0 %v1164
      %1209 = vmatprep.subr.bf16.mxu0 0
      %1210 = vmatpush1.bf16.msra.mxu0 %v1165
      %1211 = vmatprep.subr.bf16.mxu0 0
      %1212 = vmatpush1.bf16.msra.mxu0 %v1166
      %1213 = vmatprep.subr.bf16.mxu0 0
      %1214 = vmatpush1.bf16.msra.mxu0 %v1167
      %1215 = vmatprep.subr.bf16.mxu0 0
      %1216 = vmatpush1.bf16.msra.mxu0 %v1168
      %1217 = vmatprep.mubr.bf16.mxu0 %v1035
      %1218 = vmatmul.mubr.bf16.gmra.mrb[0].mxu0 %v1034
      %v1219 = vpop.f32.mrb[0].mxu0
      %v1220 = vadd.f32 %v1087, %v1219
      %v1221 = vpop.f32.mrb[0].mxu0
      %v1222 = vpop.f32.mrb[0].mxu0
      %v1223 = vadd.f32 %v1087, %v1222
      %v1224 = vpop.f32.mrb[0].mxu0
      %1225 = vmatprep.mubr.bf16.mxu0 %v1037
      %1226 = vmatmul.mubr.bf16.gmra.mrb[0].mxu0 %v1036
      %v1227 = vpop.f32.mrb[0].mxu0
      %v1228 = vadd.f32 %v1087, %v1227
      %v1229 = vpop.f32.mrb[0].mxu0
      %v1230 = vpop.f32.mrb[0].mxu0
      %v1231 = vadd.f32 %v1087, %v1230
      %v1232 = vpop.f32.mrb[0].mxu0
      %1233 = vmatprep.mubr.bf16.mxu0 %v1039
      %1234 = vmatmul.mubr.bf16.gmra.mrb[0].mxu0 %v1038
      %v1235 = vpop.f32.mrb[0].mxu0
      %v1236 = vadd.f32 %v1087, %v1235
      %v1237 = vpop.f32.mrb[0].mxu0
      %v1238 = vpop.f32.mrb[0].mxu0
      %v1239 = vadd.f32 %v1087, %v1238
      %v1240 = vpop.f32.mrb[0].mxu0
      %1241 = vmatprep.mubr.bf16.mxu0 %v1041
      %1242 = vmatmul.mubr.bf16.gmra.mrb[0].mxu0 %v1040
      %v1243 = vpop.f32.mrb[0].mxu0
      %v1244 = vadd.f32 %v1087, %v1243
      %v1245 = vpop.f32.mrb[0].mxu0
      %v1246 = vpop.f32.mrb[0].mxu0
      %v1247 = vadd.f32 %v1087, %v1246
      %v1248 = vpop.f32.mrb[0].mxu0
      %1249 = vmatprep.mubr.bf16.mxu0 %v1043
      %1250 = vmatmul.mubr.bf16.gmra.mrb[0].mxu0 %v1042
      %v1251 = vpop.f32.mrb[0].mxu0
      %v1252 = vadd.f32 %v1087, %v1251
      %v1253 = vpop.f32.mrb[0].mxu0
      %v1254 = vpop.f32.mrb[0].mxu0
      %v1255 = vadd.f32 %v1087, %v1254
      %v1256 = vpop.f32.mrb[0].mxu0
      %1257 = vmatprep.mubr.bf16.mxu0 %v1045
      %1258 = vmatmul.mubr.bf16.gmra.mrb[0].mxu0 %v1044
      %v1259 = vpop.f32.mrb[0].mxu0
      %v1260 = vadd.f32 %v1087, %v1259
      %v1261 = vpop.f32.mrb[0].mxu0
      %v1262 = vpop.f32.mrb[0].mxu0
      %v1263 = vadd.f32 %v1087, %v1262
      %v1264 = vpop.f32.mrb[0].mxu0
      %1265 = vmatprep.mubr.bf16.mxu0 %v1047
      %1266 = vmatmul.mubr.bf16.gmra.mrb[0].mxu0 %v1046
      %v1267 = vpop.f32.mrb[0].mxu0
      %v1268 = vadd.f32 %v1087, %v1267
      %v1269 = vpop.f32.mrb[0].mxu0
      %v1270 = vpop.f32.mrb[0].mxu0
      %v1271 = vadd.f32 %v1087, %v1270
      %v1272 = vpop.f32.mrb[0].mxu0
      %1273 = vmatprep.mubr.bf16.mxu0 %v1049
      %1274 = vmatmul.mubr.bf16.gmra.mrb[0].mxu0 %v1048
      %v1275 = vpop.f32.mrb[0].mxu0
      %v1276 = vadd.f32 %v1087, %v1275
      %v1277 = vpop.f32.mrb[0].mxu0
      %v1278 = vpop.f32.mrb[0].mxu0
      %v1279 = vadd.f32 %v1087, %v1278
      %v1280 = vpop.f32.mrb[0].mxu0
      %1281 = vdwg.mxu0
      %v1282 = vld [vmem:[%s7] sm:$0x1]
      %v1283 = vld [vmem:[%s8] sm:$0x1]
      %1284 = vadd.xlane.f32.xlu0 %v1220
      %v1285 = vpop.xlane.xlu0 %1284
      %1286 = vadd.xlane.f32.xlu0 %v1223
      %v1287 = vpop.xlane.xlu0 %1286
      %1288 = vadd.xlane.f32.xlu0 %v1228
      %v1289 = vpop.xlane.xlu0 %1288
      %1290 = vadd.xlane.f32.xlu0 %v1231
      %v1291 = vpop.xlane.xlu0 %1290
      %1292 = vadd.xlane.f32.xlu0 %v1236
      %v1293 = vpop.xlane.xlu0 %1292
      %1294 = vadd.xlane.f32.xlu0 %v1239
      %v1295 = vpop.xlane.xlu0 %1294
      %1296 = vadd.xlane.f32.xlu0 %v1244
      %v1297 = vpop.xlane.xlu0 %1296
      %1298 = vadd.xlane.f32.xlu0 %v1247
      %v1299 = vpop.xlane.xlu0 %1298
      %1300 = vadd.xlane.f32.xlu0 %v1252
      %v1301 = vpop.xlane.xlu0 %1300
      %1302 = vadd.xlane.f32.xlu0 %v1255
      %v1303 = vpop.xlane.xlu0 %1302
      %1304 = vadd.xlane.f32.xlu0 %v1260
      %v1305 = vpop.xlane.xlu0 %1304
      %1306 = vadd.xlane.f32.xlu0 %v1263
      %v1307 = vpop.xlane.xlu0 %1306
      %1308 = vadd.xlane.f32.xlu0 %v1268
      %v1309 = vpop.xlane.xlu0 %1308
      %1310 = vadd.xlane.f32.xlu0 %v1271
      %v1311 = vpop.xlane.xlu0 %1310
      %1312 = vadd.xlane.f32.xlu0 %v1276
      %v1313 = vpop.xlane.xlu0 %1312
      %1314 = vadd.xlane.f32.xlu0 %v1279
      %v1315 = vpop.xlane.xlu0 %1314
      %v1316 = vrcp.pop 128.0
      %v1317 = vmul.f32 %v1285, %v1316
      %v1318 = vmul.f32 %v1287, %v1316
      %v1319 = vmul.f32 %v1289, %v1316
      %v1320 = vmul.f32 %v1291, %v1316
      %v1321 = vmul.f32 %v1293, %v1316
      %v1322 = vmul.f32 %v1295, %v1316
      %v1323 = vmul.f32 %v1297, %v1316
      %v1324 = vmul.f32 %v1299, %v1316
      %v1325 = vmul.f32 %v1301, %v1316
      %v1326 = vmul.f32 %v1303, %v1316
      %v1327 = vmul.f32 %v1305, %v1316
      %v1328 = vmul.f32 %v1307, %v1316
      %v1329 = vmul.f32 %v1309, %v1316
      %v1330 = vmul.f32 %v1311, %v1316
      %v1331 = vmul.f32 %v1313, %v1316
      %v1332 = vmul.f32 %v1315, %v1316
      %v1333 = vmul.f32 %v1220, %v1220
      %v1334 = vmul.f32 %v1223, %v1223
      %v1335 = vmul.f32 %v1228, %v1228
      %v1336 = vmul.f32 %v1231, %v1231
      %v1337 = vmul.f32 %v1236, %v1236
      %v1338 = vmul.f32 %v1239, %v1239
      %v1339 = vmul.f32 %v1244, %v1244
      %v1340 = vmul.f32 %v1247, %v1247
      %v1341 = vmul.f32 %v1252, %v1252
      %v1342 = vmul.f32 %v1255, %v1255
      %v1343 = vmul.f32 %v1260, %v1260
      %v1344 = vmul.f32 %v1263, %v1263
      %v1345 = vmul.f32 %v1268, %v1268
      %v1346 = vmul.f32 %v1271, %v1271
      %v1347 = vmul.f32 %v1276, %v1276
      %v1348 = vmul.f32 %v1279, %v1279
      %1349 = vadd.xlane.f32.xlu0 %v1333
      %v1350 = vpop.xlane.xlu0 %1349
      %1351 = vadd.xlane.f32.xlu0 %v1334
      %v1352 = vpop.xlane.xlu0 %1351
      %1353 = vadd.xlane.f32.xlu0 %v1335
      %v1354 = vpop.xlane.xlu0 %1353
      %1355 = vadd.xlane.f32.xlu0 %v1336
      %v1356 = vpop.xlane.xlu0 %1355
      %1357 = vadd.xlane.f32.xlu0 %v1337
      %v1358 = vpop.xlane.xlu0 %1357
      %1359 = vadd.xlane.f32.xlu0 %v1338
      %v1360 = vpop.xlane.xlu0 %1359
      %1361 = vadd.xlane.f32.xlu0 %v1339
      %v1362 = vpop.xlane.xlu0 %1361
      %1363 = vadd.xlane.f32.xlu0 %v1340
      %v1364 = vpop.xlane.xlu0 %1363
      %1365 = vadd.xlane.f32.xlu0 %v1341
      %v1366 = vpop.xlane.xlu0 %1365
      %1367 = vadd.xlane.f32.xlu0 %v1342
      %v1368 = vpop.xlane.xlu0 %1367
      %1369 = vadd.xlane.f32.xlu0 %v1343
      %v1370 = vpop.xlane.xlu0 %1369
      %1371 = vadd.xlane.f32.xlu0 %v1344
      %v1372 = vpop.xlane.xlu0 %1371
      %1373 = vadd.xlane.f32.xlu0 %v1345
      %v1374 = vpop.xlane.xlu0 %1373
      %1375 = vadd.xlane.f32.xlu0 %v1346
      %v1376 = vpop.xlane.xlu0 %1375
      %1377 = vadd.xlane.f32.xlu0 %v1347
      %v1378 = vpop.xlane.xlu0 %1377
      %1379 = vadd.xlane.f32.xlu0 %v1348
      %v1380 = vpop.xlane.xlu0 %1379
      %v1381 = vmul.f32 %v1350, %v1316
      %v1382 = vmul.f32 %v1352, %v1316
      %v1383 = vmul.f32 %v1354, %v1316
      %v1384 = vmul.f32 %v1356, %v1316
      %v1385 = vmul.f32 %v1358, %v1316
      %v1386 = vmul.f32 %v1360, %v1316
      %v1387 = vmul.f32 %v1362, %v1316
      %v1388 = vmul.f32 %v1364, %v1316
      %v1389 = vmul.f32 %v1366, %v1316
      %v1390 = vmul.f32 %v1368, %v1316
      %v1391 = vmul.f32 %v1370, %v1316
      %v1392 = vmul.f32 %v1372, %v1316
      %v1393 = vmul.f32 %v1374, %v1316
      %v1394 = vmul.f32 %v1376, %v1316
      %v1395 = vmul.f32 %v1378, %v1316
      %v1396 = vmul.f32 %v1380, %v1316
      %v1397 = vmul.f32 %v1317, %v1317
      %v1398 = vmul.f32 %v1318, %v1318
      %v1399 = vmul.f32 %v1319, %v1319
      %v1400 = vmul.f32 %v1320, %v1320
      %v1401 = vmul.f32 %v1321, %v1321
      %v1402 = vmul.f32 %v1322, %v1322
      %v1403 = vmul.f32 %v1323, %v1323
      %v1404 = vmul.f32 %v1324, %v1324
      %v1405 = vmul.f32 %v1325, %v1325
      %v1406 = vmul.f32 %v1326, %v1326
      %v1407 = vmul.f32 %v1327, %v1327
      %v1408 = vmul.f32 %v1328, %v1328
      %v1409 = vmul.f32 %v1329, %v1329
      %v1410 = vmul.f32 %v1330, %v1330
      %v1411 = vmul.f32 %v1331, %v1331
      %v1412 = vmul.f32 %v1332, %v1332
      %v1413 = vsub.f32 %v1381, %v1397
      %v1414 = vsub.f32 %v1382, %v1398
      %v1415 = vsub.f32 %v1383, %v1399
      %v1416 = vsub.f32 %v1384, %v1400
      %v1417 = vsub.f32 %v1385, %v1401
      %v1418 = vsub.f32 %v1386, %v1402
      %v1419 = vsub.f32 %v1387, %v1403
      %v1420 = vsub.f32 %v1388, %v1404
      %v1421 = vsub.f32 %v1389, %v1405
      %v1422 = vsub.f32 %v1390, %v1406
      %v1423 = vsub.f32 %v1391, %v1407
      %v1424 = vsub.f32 %v1392, %v1408
      %v1425 = vsub.f32 %v1393, %v1409
      %v1426 = vsub.f32 %v1394, %v1410
      %v1427 = vsub.f32 %v1395, %v1411
      %v1428 = vsub.f32 %v1396, %v1412
      %v1429 = vmax.f32 %v1413, 0.0
      %v1430 = vmax.f32 %v1414, 0.0
      %v1431 = vmax.f32 %v1415, 0.0
      %v1432 = vmax.f32 %v1416, 0.0
      %v1433 = vmax.f32 %v1417, 0.0
      %v1434 = vmax.f32 %v1418, 0.0
      %v1435 = vmax.f32 %v1419, 0.0
      %v1436 = vmax.f32 %v1420, 0.0
      %v1437 = vmax.f32 %v1421, 0.0
      %v1438 = vmax.f32 %v1422, 0.0
      %v1439 = vmax.f32 %v1423, 0.0
      %v1440 = vmax.f32 %v1424, 0.0
      %v1441 = vmax.f32 %v1425, 0.0
      %v1442 = vmax.f32 %v1426, 0.0
      %v1443 = vmax.f32 %v1427, 0.0
      %v1444 = vmax.f32 %v1428, 0.0
      %v1445 = vadd.f32 %v1429, 1e-05
      %v1446 = vadd.f32 %v1430, 1e-05
      %v1447 = vadd.f32 %v1431, 1e-05
      %v1448 = vadd.f32 %v1432, 1e-05
      %v1449 = vadd.f32 %v1433, 1e-05
      %v1450 = vadd.f32 %v1434, 1e-05
      %v1451 = vadd.f32 %v1435, 1e-05
      %v1452 = vadd.f32 %v1436, 1e-05
      %v1453 = vadd.f32 %v1437, 1e-05
      %v1454 = vadd.f32 %v1438, 1e-05
      %v1455 = vadd.f32 %v1439, 1e-05
      %v1456 = vadd.f32 %v1440, 1e-05
      %v1457 = vadd.f32 %v1441, 1e-05
      %v1458 = vadd.f32 %v1442, 1e-05
      %v1459 = vadd.f32 %v1443, 1e-05
      %v1460 = vadd.f32 %v1444, 1e-05
      %v1461 = vrsqrt.pop %v1445
      %v1462 = vrsqrt.pop %v1446
      %v1463 = vrsqrt.pop %v1447
      %v1464 = vrsqrt.pop %v1448
      %v1465 = vrsqrt.pop %v1449
      %v1466 = vrsqrt.pop %v1450
      %v1467 = vrsqrt.pop %v1451
      %v1468 = vrsqrt.pop %v1452
      %v1469 = vrsqrt.pop %v1453
      %v1470 = vrsqrt.pop %v1454
      %v1471 = vrsqrt.pop %v1455
      %v1472 = vrsqrt.pop %v1456
      %v1473 = vrsqrt.pop %v1457
      %v1474 = vrsqrt.pop %v1458
      %v1475 = vrsqrt.pop %v1459
      %v1476 = vrsqrt.pop %v1460
      %v1477 = vsub.f32 %v1220, %v1317
      %v1478 = vsub.f32 %v1223, %v1318
      %v1479 = vsub.f32 %v1228, %v1319
      %v1480 = vsub.f32 %v1231, %v1320
      %v1481 = vsub.f32 %v1236, %v1321
      %v1482 = vsub.f32 %v1239, %v1322
      %v1483 = vsub.f32 %v1244, %v1323
      %v1484 = vsub.f32 %v1247, %v1324
      %v1485 = vsub.f32 %v1252, %v1325
      %v1486 = vsub.f32 %v1255, %v1326
      %v1487 = vsub.f32 %v1260, %v1327
      %v1488 = vsub.f32 %v1263, %v1328
      %v1489 = vsub.f32 %v1268, %v1329
      %v1490 = vsub.f32 %v1271, %v1330
      %v1491 = vsub.f32 %v1276, %v1331
      %v1492 = vsub.f32 %v1279, %v1332
      %v1493 = vmul.f32 %v1477, %v1461
      %v1494 = vmul.f32 %v1478, %v1462
      %v1495 = vmul.f32 %v1479, %v1463
      %v1496 = vmul.f32 %v1480, %v1464
      %v1497 = vmul.f32 %v1481, %v1465
      %v1498 = vmul.f32 %v1482, %v1466
      %v1499 = vmul.f32 %v1483, %v1467
      %v1500 = vmul.f32 %v1484, %v1468
      %v1501 = vmul.f32 %v1485, %v1469
      %v1502 = vmul.f32 %v1486, %v1470
      %v1503 = vmul.f32 %v1487, %v1471
      %v1504 = vmul.f32 %v1488, %v1472
      %v1505 = vmul.f32 %v1489, %v1473
      %v1506 = vmul.f32 %v1490, %v1474
      %v1507 = vmul.f32 %v1491, %v1475
      %v1508 = vmul.f32 %v1492, %v1476
      %v1510 = vlaneseq
      %v1511 = vshrl.u32 %v1510, 7
      %v1512 = vsub.s32 0, %v1511
      %v1513 = vrot.slane %v1282, %v1512
      %v1515 = vmul.f32 %v1493, %v1513
      %v1516 = vmul.f32 %v1494, %v1513
      %v1517 = vmul.f32 %v1495, %v1513
      %v1518 = vmul.f32 %v1496, %v1513
      %v1519 = vmul.f32 %v1497, %v1513
      %v1520 = vmul.f32 %v1498, %v1513
      %v1521 = vmul.f32 %v1499, %v1513
      %v1522 = vmul.f32 %v1500, %v1513
      %v1523 = vmul.f32 %v1501, %v1513
      %v1524 = vmul.f32 %v1502, %v1513
      %v1525 = vmul.f32 %v1503, %v1513
      %v1526 = vmul.f32 %v1504, %v1513
      %v1527 = vmul.f32 %v1505, %v1513
      %v1528 = vmul.f32 %v1506, %v1513
      %v1529 = vmul.f32 %v1507, %v1513
      %v1530 = vmul.f32 %v1508, %v1513
      %v1532 = vlaneseq
      %v1533 = vshrl.u32 %v1532, 7
      %v1534 = vsub.s32 0, %v1533
      %v1535 = vrot.slane %v1283, %v1534
      %v1537 = vadd.f32 %v1515, %v1535
      %v1538 = vadd.f32 %v1516, %v1535
      %v1539 = vadd.f32 %v1517, %v1535
      %v1540 = vadd.f32 %v1518, %v1535
      %v1541 = vadd.f32 %v1519, %v1535
      %v1542 = vadd.f32 %v1520, %v1535
      %v1543 = vadd.f32 %v1521, %v1535
      %v1544 = vadd.f32 %v1522, %v1535
      %v1545 = vadd.f32 %v1523, %v1535
      %v1546 = vadd.f32 %v1524, %v1535
      %v1547 = vadd.f32 %v1525, %v1535
      %v1548 = vadd.f32 %v1526, %v1535
      %v1549 = vadd.f32 %v1527, %v1535
      %v1550 = vadd.f32 %v1528, %v1535
      %v1551 = vadd.f32 %v1529, %v1535
      %v1552 = vadd.f32 %v1530, %v1535
      %v1553 = vmax.f32 %v1537, 0.0
      %v1554 = vmax.f32 %v1538, 0.0
      %v1555 = vmax.f32 %v1539, 0.0
      %v1556 = vmax.f32 %v1540, 0.0
      %v1557 = vmax.f32 %v1541, 0.0
      %v1558 = vmax.f32 %v1542, 0.0
      %v1559 = vmax.f32 %v1543, 0.0
      %v1560 = vmax.f32 %v1544, 0.0
      %v1561 = vmax.f32 %v1545, 0.0
      %v1562 = vmax.f32 %v1546, 0.0
      %v1563 = vmax.f32 %v1547, 0.0
      %v1564 = vmax.f32 %v1548, 0.0
      %v1565 = vmax.f32 %v1549, 0.0
      %v1566 = vmax.f32 %v1550, 0.0
      %v1567 = vmax.f32 %v1551, 0.0
      %v1568 = vmax.f32 %v1552, 0.0
      %v1569 = vpack.c.bf16 %v1554, %v1553
      %v1570 = vpack.c.bf16 %v1556, %v1555
      %v1571 = vpack.c.bf16 %v1558, %v1557
      %v1572 = vpack.c.bf16 %v1560, %v1559
      %v1573 = vpack.c.bf16 %v1562, %v1561
      %v1574 = vpack.c.bf16 %v1564, %v1563
      %v1575 = vpack.c.bf16 %v1566, %v1565
      %v1576 = vpack.c.bf16 %v1568, %v1567
      %v1577 = vld [vmem:[%s9] sm:$0xf]
      %v1578 = vld [vmem:[%s9 + $0x4] sm:$0xf]
      %v1579 = vld [vmem:[%s9 + $0x8] sm:$0xf]
      %v1580 = vld [vmem:[%s9 + $0xc] sm:$0xf]
      %v1581 = vld [vmem:[%s9 + $0x10] sm:$0xf]
      %v1582 = vld [vmem:[%s9 + $0x14] sm:$0xf]
      %v1583 = vld [vmem:[%s9 + $0x18] sm:$0xf]
      %v1584 = vld [vmem:[%s9 + $0x1c] sm:$0xf]
      %v1585 = vld [vmem:[%s9 + $0x20] sm:$0xf]
      %v1586 = vld [vmem:[%s9 + $0x24] sm:$0xf]
      %v1587 = vld [vmem:[%s9 + $0x28] sm:$0xf]
      %v1588 = vld [vmem:[%s9 + $0x2c] sm:$0xf]
      %v1589 = vld [vmem:[%s9 + $0x30] sm:$0xf]
      %v1590 = vld [vmem:[%s9 + $0x34] sm:$0xf]
      %v1591 = vld [vmem:[%s9 + $0x38] sm:$0xf]
      %v1592 = vld [vmem:[%s9 + $0x3c] sm:$0xf]
      %v1593 = vld [vmem:[%s10] sm:$0x1]
      %v1595 = vlaneseq
      %v1596 = vshrl.u32 %v1595, 7
      %v1597 = vsub.s32 0, %v1596
      %v1598 = vrot.slane %v1593, %v1597
      %v1616 = vunpack.c.l.b16 %v1577
      %v1617 = vunpack.c.l.b16 %v1578
      %v1618 = vunpack.c.l.b16 %v1579
      %v1619 = vunpack.c.l.b16 %v1580
      %v1620 = vunpack.c.l.b16 %v1581
      %v1621 = vunpack.c.l.b16 %v1582
      %v1622 = vunpack.c.l.b16 %v1583
      %v1623 = vunpack.c.l.b16 %v1584
      %v1624 = vunpack.c.l.b16 %v1585
      %v1625 = vunpack.c.l.b16 %v1586
      %v1626 = vunpack.c.l.b16 %v1587
      %v1627 = vunpack.c.l.b16 %v1588
      %v1628 = vunpack.c.l.b16 %v1589
      %v1629 = vunpack.c.l.b16 %v1590
      %v1630 = vunpack.c.l.b16 %v1591
      %v1631 = vunpack.c.l.b16 %v1592
      %v1632 = vpack.c.b16 %v1617, %v1616
      %v1633 = vpack.c.b16 %v1619, %v1618
      %v1634 = vpack.c.b16 %v1621, %v1620
      %v1635 = vpack.c.b16 %v1623, %v1622
      %v1636 = vpack.c.b16 %v1625, %v1624
      %v1637 = vpack.c.b16 %v1627, %v1626
      %v1638 = vpack.c.b16 %v1629, %v1628
      %v1639 = vpack.c.b16 %v1631, %v1630
      %1648 = vmatprep.subr.bf16.mxu0 0
      %1649 = vmatpush1.bf16.msra.mxu0 %v1632
      %1650 = vmatprep.subr.bf16.mxu0 0
      %1651 = vmatpush1.bf16.msra.mxu0 %v1633
      %1652 = vmatprep.subr.bf16.mxu0 0
      %1653 = vmatpush1.bf16.msra.mxu0 %v1634
      %1654 = vmatprep.subr.bf16.mxu0 0
      %1655 = vmatpush1.bf16.msra.mxu0 %v1635
      %1656 = vmatprep.subr.bf16.mxu0 0
      %1657 = vmatpush1.bf16.msra.mxu0 %v1636
      %1658 = vmatprep.subr.bf16.mxu0 0
      %1659 = vmatpush1.bf16.msra.mxu0 %v1637
      %1660 = vmatprep.subr.bf16.mxu0 0
      %1661 = vmatpush1.bf16.msra.mxu0 %v1638
      %1662 = vmatprep.subr.bf16.mxu0 0
      %1663 = vmatpush1.bf16.msra.mxu0 %v1639
      %1664 = vmatprep.subr.bf16.mxu0 0
      %1665 = vmatpush1.bf16.msra.mxu0 0
      %1666 = vmatprep.subr.bf16.mxu0 0
      %1667 = vmatpush1.bf16.msra.mxu0 0
      %1668 = vmatprep.subr.bf16.mxu0 0
      %1669 = vmatpush1.bf16.msra.mxu0 0
      %1670 = vmatprep.subr.bf16.mxu0 0
      %1671 = vmatpush1.bf16.msra.mxu0 0
      %1672 = vmatprep.subr.bf16.mxu0 0
      %1673 = vmatpush1.bf16.msra.mxu0 0
      %1674 = vmatprep.subr.bf16.mxu0 0
      %1675 = vmatpush1.bf16.msra.mxu0 0
      %1676 = vmatprep.subr.bf16.mxu0 0
      %1677 = vmatpush1.bf16.msra.mxu0 0
      %1678 = vmatprep.subr.bf16.mxu0 0
      %1679 = vmatpush1.bf16.msra.mxu0 0
      %1680 = vmatprep.mubr.bf16.mxu0 0
      %1681 = vmatmul.mubr.bf16.gmra.mrb[0].mxu0 %v1569
      %v1682 = vpop.f32.mrb[0].mxu0
      %v1683 = vadd.f32 %v1598, %v1682
      %v1684 = vpop.f32.mrb[0].mxu0
      %v1685 = vpop.f32.mrb[0].mxu0
      %v1686 = vadd.f32 %v1598, %v1685
      %v1687 = vpop.f32.mrb[0].mxu0
      %1688 = vmatprep.mubr.bf16.mxu0 0
      %1689 = vmatmul.mubr.bf16.gmra.mrb[0].mxu0 %v1570
      %v1690 = vpop.f32.mrb[0].mxu0
      %v1691 = vadd.f32 %v1598, %v1690
      %v1692 = vpop.f32.mrb[0].mxu0
      %v1693 = vpop.f32.mrb[0].mxu0
      %v1694 = vadd.f32 %v1598, %v1693
      %v1695 = vpop.f32.mrb[0].mxu0
      %1696 = vmatprep.mubr.bf16.mxu0 0
      %1697 = vmatmul.mubr.bf16.gmra.mrb[0].mxu0 %v1571
      %v1698 = vpop.f32.mrb[0].mxu0
      %v1699 = vadd.f32 %v1598, %v1698
      %v1700 = vpop.f32.mrb[0].mxu0
      %v1701 = vpop.f32.mrb[0].mxu0
      %v1702 = vadd.f32 %v1598, %v1701
      %v1703 = vpop.f32.mrb[0].mxu0
      %1704 = vmatprep.mubr.bf16.mxu0 0
      %1705 = vmatmul.mubr.bf16.gmra.mrb[0].mxu0 %v1572
      %v1706 = vpop.f32.mrb[0].mxu0
      %v1707 = vadd.f32 %v1598, %v1706
      %v1708 = vpop.f32.mrb[0].mxu0
      %v1709 = vpop.f32.mrb[0].mxu0
      %v1710 = vadd.f32 %v1598, %v1709
      %v1711 = vpop.f32.mrb[0].mxu0
      %1712 = vmatprep.mubr.bf16.mxu0 0
      %1713 = vmatmul.mubr.bf16.gmra.mrb[0].mxu0 %v1573
      %v1714 = vpop.f32.mrb[0].mxu0
      %v1715 = vadd.f32 %v1598, %v1714
      %v1716 = vpop.f32.mrb[0].mxu0
      %v1717 = vpop.f32.mrb[0].mxu0
      %v1718 = vadd.f32 %v1598, %v1717
      %v1719 = vpop.f32.mrb[0].mxu0
      %1720 = vmatprep.mubr.bf16.mxu0 0
      %1721 = vmatmul.mubr.bf16.gmra.mrb[0].mxu0 %v1574
      %v1722 = vpop.f32.mrb[0].mxu0
      %v1723 = vadd.f32 %v1598, %v1722
      %v1724 = vpop.f32.mrb[0].mxu0
      %v1725 = vpop.f32.mrb[0].mxu0
      %v1726 = vadd.f32 %v1598, %v1725
      %v1727 = vpop.f32.mrb[0].mxu0
      %1728 = vmatprep.mubr.bf16.mxu0 0
      %1729 = vmatmul.mubr.bf16.gmra.mrb[0].mxu0 %v1575
      %v1730 = vpop.f32.mrb[0].mxu0
      %v1731 = vadd.f32 %v1598, %v1730
      %v1732 = vpop.f32.mrb[0].mxu0
      %v1733 = vpop.f32.mrb[0].mxu0
      %v1734 = vadd.f32 %v1598, %v1733
      %v1735 = vpop.f32.mrb[0].mxu0
      %1736 = vmatprep.mubr.bf16.mxu0 0
      %1737 = vmatmul.mubr.bf16.gmra.mrb[0].mxu0 %v1576
      %v1738 = vpop.f32.mrb[0].mxu0
      %v1739 = vadd.f32 %v1598, %v1738
      %v1740 = vpop.f32.mrb[0].mxu0
      %v1741 = vpop.f32.mrb[0].mxu0
      %v1742 = vadd.f32 %v1598, %v1741
      %v1743 = vpop.f32.mrb[0].mxu0
      %1744 = vdwg.mxu0
      %vm1745 = vcmask 64512
      %1746 = vst.msk [vmem:[%s388] sm:$0xff] %vm1745, %v1683
      %1747 = vst.msk [vmem:[%s388 + $0x8] sm:$0xff] %vm1745, %v1686
      %1748 = vst.msk [vmem:[%s388 + $0x10] sm:$0xff] %vm1745, %v1691
      %1749 = vst.msk [vmem:[%s388 + $0x18] sm:$0xff] %vm1745, %v1694
      %1750 = vst.msk [vmem:[%s388 + $0x20] sm:$0xff] %vm1745, %v1699
      %1751 = vst.msk [vmem:[%s388 + $0x28] sm:$0xff] %vm1745, %v1702
      %1752 = vst.msk [vmem:[%s388 + $0x30] sm:$0xff] %vm1745, %v1707
      %1753 = vst.msk [vmem:[%s388 + $0x38] sm:$0xff] %vm1745, %v1710
      %1754 = vst.msk [vmem:[%s388 + $0x40] sm:$0xff] %vm1745, %v1715
      %1755 = vst.msk [vmem:[%s388 + $0x48] sm:$0xff] %vm1745, %v1718
      %1756 = vst.msk [vmem:[%s388 + $0x50] sm:$0xff] %vm1745, %v1723
      %1757 = vst.msk [vmem:[%s388 + $0x58] sm:$0xff] %vm1745, %v1726
      %1758 = vst.msk [vmem:[%s388 + $0x60] sm:$0xff] %vm1745, %v1731
      %1759 = vst.msk [vmem:[%s388 + $0x68] sm:$0xff] %vm1745, %v1734
      %1760 = vst.msk [vmem:[%s388 + $0x70] sm:$0xff] %vm1745, %v1739
      %1761 = vst.msk [vmem:[%s388 + $0x78] sm:$0xff] %vm1745, %v1742
      %s1762 = smul.u32 16, %s22
      %p1763 = scmp.lt.s32.totalorder %s1762, 31
      %s1764 = scalar_select %p1763, %s1762, 31
      %s1765 = smul.addr %s1764, 8
      %s1766 = scalar_lea.vmem %s11, %s1765
      // Predicated region
      $region65: #{policy_network_forward.1} parent=63 // pred_check
        %p1767 = pneg %p276
      $region66: #{policy_network_forward.1} parent=63 // pred_check_branch
        %1769 = sbr.rel (%p1767) target = $region68
      $region67: #{policy_network_forward.1} parent=63 // pred_region
        %s1770 = smul.u32 16, %s22
      $region68: #{policy_network_forward.1} parent=63 // pred_fallthru
        _
    $region64: #{policy_network_forward.1} parent=5 // pred_fallthru
      _
    %p1771 = scmp.le.s32.totalorder 2, %s17
    // Predicated region
    $region69: #{policy_network_forward.1} parent=5 // pred_check
      %p1772 = pneg %p1771
    $region70: #{policy_network_forward.1} parent=5 // pred_check_branch
      %1774 = sbr.rel (%p1772) target = $region72
    $region71: #{policy_network_forward.1} parent=5 // pred_region
      %s1775 = ssub.s32 %s17, 2
      // Predicated region
      $region73: #{policy_network_forward.1} parent=71 // pred_check
        %p1776 = pneg %p282
      $region74: #{policy_network_forward.1} parent=71 // pred_check_branch
        %1778 = sbr.rel (%p1776) target = $region76
      $region75: #{policy_network_forward.1} parent=71 // pred_region
        %s1779 = smul.u32 16, %s23
        %p1780 = scmp.lt.s32.totalorder %s1779, 31
        %s1781 = scalar_select %p1780, %s1779, 31
        %s1782 = smul.addr %s1781, 8
        %s1783 = scalar_lea.vmem %s11, %s1782
      $region76: #{policy_network_forward.1} parent=71 // pred_fallthru
        _
    $region72: #{policy_network_forward.1} parent=5 // pred_fallthru
      _
  $region6: #{policy_network_forward.1} parent=0 // loop_footer
    %s21 = sadd.s32 1, %s17
  $region7: #{policy_network_forward.1} parent=0 // loop_footer_branch
    %16 = sbr.rel target = $region3
  $region8: #{policy_network_forward.1} parent=0 // loop_exit
    _

</llo_original>
